<compile_context>
chip_gen: v7x
topology: tpu7x:2x2x1
jax: 0.10.0
libtpu: 0.0.40
codegen_flags: <defaults>
</compile_context>

<pallas_src>
import jax
import jax.numpy as jnp
from jax.experimental import pallas as pl
from jax.experimental.pallas import tpu as pltpu

IN_FEATURES = 784
H1, H2, H3, OUT = 256, 128, 64, 10
VMEM_LIMIT_BYTES = 32 * 1024 * 1024


def _round_up(x, m):
    return (x + m - 1) // m * m


def _default_tm():
    """Per-generation batch-tile default: 2048 on v6e/v7x, 1024 otherwise."""
    try:
        kind = jax.devices()[0].device_kind.lower()
    except Exception:
        return 1024
    return 2048 if ("v6" in kind or "v7" in kind) else 1024


def mlp_kernel(x_ref,
               w1_ref, b1_ref,
               w2_ref, b2_ref,
               w3_ref, b3_ref,
               w4_ref, b4_ref,
               o_ref):
    """Fused forward for one batch tile: 4 MXU matmuls + bias + ReLU + log_softmax.

    x_ref: [TM, 784] f32 (cast to bf16 here, right before fc1); weights bf16;
    biases f32 [1, out].  Matmuls accumulate in f32; activations are cast back
    to bf16 before the next matmul so every layer runs at the MXU's native
    bf16 rate.
    """
    x = x_ref[...].astype(jnp.bfloat16)

    # fc1 + ReLU   (dropout == identity in eval mode)
    h = jnp.dot(x, w1_ref[...],
                preferred_element_type=jnp.float32) + b1_ref[...]
    h = jnp.maximum(h, 0.0).astype(jnp.bfloat16)

    # fc2 + ReLU
    h = jnp.dot(h, w2_ref[...],
                preferred_element_type=jnp.float32) + b2_ref[...]
    h = jnp.maximum(h, 0.0).astype(jnp.bfloat16)

    # fc3 + ReLU
    h = jnp.dot(h, w3_ref[...],
                preferred_element_type=jnp.float32) + b3_ref[...]
    h = jnp.maximum(h, 0.0).astype(jnp.bfloat16)

    # fc4 (logits stay f32)
    logits = jnp.dot(h, w4_ref[...],
                     preferred_element_type=jnp.float32) + b4_ref[...]

    # log_softmax over dim=1 (numerically stable, f32)
    m = jnp.max(logits, axis=-1, keepdims=True)
    shifted = logits - m
    lse = jnp.log(jnp.sum(jnp.exp(shifted), axis=-1, keepdims=True))
    o_ref[...] = (shifted - lse).astype(o_ref.dtype)


def _pallas_forward(x2d, weights, biases, tm_eff, grid, single_buffer_resident):
    n = x2d.shape[0]
    w1, w2, w3, w4 = weights
    b1, b2, b3, b4 = biases

    # Weights/biases: constant index_map -> DMA'd once, resident in VMEM.
    def resident(shape):
        if single_buffer_resident:
            return pl.BlockSpec(shape, lambda i: (0, 0),
                                pipeline_mode=pl.Buffered(1))
        return pl.BlockSpec(shape, lambda i: (0, 0))

    return pl.pallas_call(
        mlp_kernel,
        out_shape=jax.ShapeDtypeStruct((n, OUT), jnp.float32),
        grid=grid,
        in_specs=[
            # x batch tile, full 784-wide (block last dim == array last dim).
            pl.BlockSpec((tm_eff, IN_FEATURES), lambda i: (i, 0)),
            resident((IN_FEATURES, H1)), resident((1, H1)),   # fc1
            resident((H1, H2)),          resident((1, H2)),   # fc2
            resident((H2, H3)),          resident((1, H3)),   # fc3
            resident((H3, OUT)),         resident((1, OUT)),  # fc4
        ],
        out_specs=pl.BlockSpec((tm_eff, OUT), lambda i: (i, 0)),
        compiler_params=pltpu.CompilerParams(
            dimension_semantics=("parallel",),
            vmem_limit_bytes=VMEM_LIMIT_BYTES),
    )(x2d, w1, b1, w2, b2, w3, b3, w4, b4)


def my_neural_net_forward(x, params, *, tm=None):
    """x: [N, 784] float32.  params: dict of (W, b) per layer, W is [in, out] f32."""
    n = x.shape[0]
    x2d = x.reshape(n, -1)            # stays f32; bf16 cast happens in-kernel
    assert x2d.shape[1] == IN_FEATURES

    w1, b1 = params["fc1"]
    w2, b2 = params["fc2"]
    w3, b3 = params["fc3"]
    w4, b4 = params["fc4"]
    weights = tuple(w.astype(jnp.bfloat16) for w in (w1, w2, w3, w4))
    biases = (b1, b2, b3, b4)

    if tm is None:
        tm = _default_tm()
    tm_eff = min(tm, _round_up(n, 8))
    # Ensure >= 2 tiles when possible so v7x's two TensorCores both get work.
    if pl.cdiv(n, tm_eff) < 2 and n >= 16:
        tm_eff = _round_up(pl.cdiv(n, 2), 8)
    grid = (pl.cdiv(n, tm_eff),)      # ragged last block handled by Pallas

    try:
        return _pallas_forward(x2d, weights, biases, tm_eff, grid, True)
    except Exception:
        # pipeline_mode=pl.Buffered(1) not supported on this jax version;
        # fall back to default (double-buffered) resident specs.
        return _pallas_forward(x2d, weights, biases, tm_eff, grid, False)


def init_params(key):
    """Deterministic Kaiming-uniform-style init matching nn.Linear shapes.

    Weights are stored transposed relative to PyTorch ([in, out] vs [out, in])
    so the kernel computes x @ W directly.  Biases are stored as [1, out] so
    they broadcast over the batch (sublane) axis.
    """
    dims = [(IN_FEATURES, H1), (H1, H2), (H2, H3), (H3, OUT)]
    names = ["fc1", "fc2", "fc3", "fc4"]
    params = {}
    for name, (fan_in, fan_out) in zip(names, dims):
        key, kw, kb = jax.random.split(key, 3)
        bound = 1.0 / jnp.sqrt(jnp.float32(fan_in))
        w = jax.random.uniform(kw, (fan_in, fan_out), jnp.float32, -bound, bound)
        b = jax.random.uniform(kb, (1, fan_out), jnp.float32, -bound, bound)
        params[name] = (w, b)
    return params


def reference_forward(x, params):
    """Pure-JAX reference replicating the kernel's bf16 rounding points."""
    h = x.reshape(x.shape[0], -1).astype(jnp.bfloat16).astype(jnp.float32)
    for name in ("fc1", "fc2", "fc3"):
        w, b = params[name]
        w = w.astype(jnp.bfloat16).astype(jnp.float32)
        h = jnp.maximum(h @ w + b, 0.0)
        h = h.astype(jnp.bfloat16).astype(jnp.float32)
    w, b = params["fc4"]
    w = w.astype(jnp.bfloat16).astype(jnp.float32)
    logits = h @ w + b
    return jax.nn.log_softmax(logits, axis=-1)


if __name__ == "__main__":
    key = jax.random.PRNGKey(0)
    key, kx = jax.random.split(key)

    N = 32  # small demo batch
    x = jax.random.normal(kx, (N, IN_FEATURES), jnp.float32)
    params = init_params(key)

    out = my_neural_net_forward(x, params)
    out = jax.block_until_ready(out)

    assert out.shape == (N, OUT)

    # sanity 1: log_softmax rows must (approximately) exponentiate-sum to 1
    row_sums = jnp.sum(jnp.exp(out), axis=-1)
    assert bool(jnp.all(jnp.abs(row_sums - 1.0) < 1e-3))

    # sanity 2: matches pure-JAX reference (loose tol for bf16 matmul path)
    ref = reference_forward(x, params)
    assert bool(jnp.max(jnp.abs(out - ref)) < 2e-2)

    print("KERNEL_OK")
</pallas_src>

<mosaic_0001>
module attributes {stable_mosaic.version = 11 : i64} {
  func.func @mlp_kernel(%arg0: i32, %arg1: memref<16x784xf32, #tpu.memory_space<vmem>>, %arg2: memref<784x256xbf16, #tpu.memory_space<vmem>>, %arg3: memref<1x256xf32, #tpu.memory_space<vmem>>, %arg4: memref<256x128xbf16, #tpu.memory_space<vmem>>, %arg5: memref<1x128xf32, #tpu.memory_space<vmem>>, %arg6: memref<128x64xbf16, #tpu.memory_space<vmem>>, %arg7: memref<1x64xf32, #tpu.memory_space<vmem>>, %arg8: memref<64x10xbf16, #tpu.memory_space<vmem>>, %arg9: memref<1x10xf32, #tpu.memory_space<vmem>>, %arg10: memref<16x10xf32, #tpu.memory_space<vmem>>) attributes {dimension_semantics = [#tpu.dimension_semantics<parallel>], iteration_bounds = array<i64: 2>, scalar_prefetch = 0 : i64, scratch_operands = 0 : i64, tpu.core_type = #tpu.core_type<tc>, window_params = [{transform_indices = @transform_0, window_bounds = array<i64: 16, 784>}, {pipeline_mode = #tpu.pipeline_mode<synchronous>, transform_indices = @transform_1, window_bounds = array<i64: 784, 256>}, {pipeline_mode = #tpu.pipeline_mode<synchronous>, transform_indices = @transform_2, window_bounds = array<i64: 1, 256>}, {pipeline_mode = #tpu.pipeline_mode<synchronous>, transform_indices = @transform_3, window_bounds = array<i64: 256, 128>}, {pipeline_mode = #tpu.pipeline_mode<synchronous>, transform_indices = @transform_4, window_bounds = array<i64: 1, 128>}, {pipeline_mode = #tpu.pipeline_mode<synchronous>, transform_indices = @transform_5, window_bounds = array<i64: 128, 64>}, {pipeline_mode = #tpu.pipeline_mode<synchronous>, transform_indices = @transform_6, window_bounds = array<i64: 1, 64>}, {pipeline_mode = #tpu.pipeline_mode<synchronous>, transform_indices = @transform_7, window_bounds = array<i64: 64, 10>}, {pipeline_mode = #tpu.pipeline_mode<synchronous>, transform_indices = @transform_8, window_bounds = array<i64: 1, 10>}, {transform_indices = @transform_9, window_bounds = array<i64: 16, 10>}]} {
    %c0 = arith.constant 0 : index
    %c0_0 = arith.constant 0 : index
    %0 = vector.load %arg1[%c0, %c0_0] : memref<16x784xf32, #tpu.memory_space<vmem>>, vector<16x784xf32>
    %1 = arith.truncf %0 : vector<16x784xf32> to vector<16x784xbf16>
    %c0_1 = arith.constant 0 : index
    %c0_2 = arith.constant 0 : index
    %2 = vector.load %arg2[%c0_1, %c0_2] : memref<784x256xbf16, #tpu.memory_space<vmem>>, vector<784x256xbf16>
    %cst = arith.constant dense<0.000000e+00> : vector<16x256xf32>
    %3 = tpu.matmul %1, %2, %cst {dimension_numbers = #tpu.dot_dimension_numbers<[1], [0], [0], [1], [0, 0, 1, 1], [], []>} : vector<16x784xbf16>, vector<784x256xbf16>, vector<16x256xf32> -> vector<16x256xf32>
    %c0_3 = arith.constant 0 : index
    %c0_4 = arith.constant 0 : index
    %4 = vector.load %arg3[%c0_3, %c0_4] : memref<1x256xf32, #tpu.memory_space<vmem>>, vector<1x256xf32>
    %5 = vector.broadcast %4 : vector<1x256xf32> to vector<16x256xf32>
    %6 = arith.addf %3, %5 : vector<16x256xf32>
    %cst_5 = arith.constant 0.000000e+00 : f32
    %7 = vector.broadcast %cst_5 : f32 to vector<16x256xf32>
    %8 = arith.maximumf %6, %7 : vector<16x256xf32>
    %9 = arith.truncf %8 : vector<16x256xf32> to vector<16x256xbf16>
    %c0_6 = arith.constant 0 : index
    %c0_7 = arith.constant 0 : index
    %10 = vector.load %arg4[%c0_6, %c0_7] : memref<256x128xbf16, #tpu.memory_space<vmem>>, vector<256x128xbf16>
    %cst_8 = arith.constant dense<0.000000e+00> : vector<16x128xf32>
    %11 = tpu.matmul %9, %10, %cst_8 {dimension_numbers = #tpu.dot_dimension_numbers<[1], [0], [0], [1], [0, 0, 1, 1], [], []>} : vector<16x256xbf16>, vector<256x128xbf16>, vector<16x128xf32> -> vector<16x128xf32>
    %c0_9 = arith.constant 0 : index
    %c0_10 = arith.constant 0 : index
    %12 = vector.load %arg5[%c0_9, %c0_10] : memref<1x128xf32, #tpu.memory_space<vmem>>, vector<1x128xf32>
    %13 = vector.broadcast %12 : vector<1x128xf32> to vector<16x128xf32>
    %14 = arith.addf %11, %13 : vector<16x128xf32>
    %cst_11 = arith.constant 0.000000e+00 : f32
    %15 = vector.broadcast %cst_11 : f32 to vector<16x128xf32>
    %16 = arith.maximumf %14, %15 : vector<16x128xf32>
    %17 = arith.truncf %16 : vector<16x128xf32> to vector<16x128xbf16>
    %c0_12 = arith.constant 0 : index
    %c0_13 = arith.constant 0 : index
    %18 = vector.load %arg6[%c0_12, %c0_13] : memref<128x64xbf16, #tpu.memory_space<vmem>>, vector<128x64xbf16>
    %cst_14 = arith.constant dense<0.000000e+00> : vector<16x64xf32>
    %19 = tpu.matmul %17, %18, %cst_14 {dimension_numbers = #tpu.dot_dimension_numbers<[1], [0], [0], [1], [0, 0, 1, 1], [], []>} : vector<16x128xbf16>, vector<128x64xbf16>, vector<16x64xf32> -> vector<16x64xf32>
    %c0_15 = arith.constant 0 : index
    %c0_16 = arith.constant 0 : index
    %20 = vector.load %arg7[%c0_15, %c0_16] : memref<1x64xf32, #tpu.memory_space<vmem>>, vector<1x64xf32>
    %21 = vector.broadcast %20 : vector<1x64xf32> to vector<16x64xf32>
    %22 = arith.addf %19, %21 : vector<16x64xf32>
    %cst_17 = arith.constant 0.000000e+00 : f32
    %23 = vector.broadcast %cst_17 : f32 to vector<16x64xf32>
    %24 = arith.maximumf %22, %23 : vector<16x64xf32>
    %25 = arith.truncf %24 : vector<16x64xf32> to vector<16x64xbf16>
    %c0_18 = arith.constant 0 : index
    %c0_19 = arith.constant 0 : index
    %26 = vector.load %arg8[%c0_18, %c0_19] : memref<64x10xbf16, #tpu.memory_space<vmem>>, vector<64x10xbf16>
    %cst_20 = arith.constant dense<0.000000e+00> : vector<16x10xf32>
    %27 = tpu.matmul %25, %26, %cst_20 {dimension_numbers = #tpu.dot_dimension_numbers<[1], [0], [0], [1], [0, 0, 1, 1], [], []>} : vector<16x64xbf16>, vector<64x10xbf16>, vector<16x10xf32> -> vector<16x10xf32>
    %c0_21 = arith.constant 0 : index
    %c0_22 = arith.constant 0 : index
    %28 = vector.load %arg9[%c0_21, %c0_22] : memref<1x10xf32, #tpu.memory_space<vmem>>, vector<1x10xf32>
    %29 = vector.broadcast %28 : vector<1x10xf32> to vector<16x10xf32>
    %30 = arith.addf %27, %29 : vector<16x10xf32>
    %cst_23 = arith.constant dense<0xFF800000> : vector<16xf32>
    %31 = vector.multi_reduction <maximumf>, %30, %cst_23 [1] : vector<16x10xf32> to vector<16xf32>
    %32 = vector.shape_cast %31 : vector<16xf32> to vector<16x1xf32>
    %33 = vector.broadcast %32 : vector<16x1xf32> to vector<16x10xf32>
    %34 = arith.subf %30, %33 : vector<16x10xf32>
    %35 = math.exp %34 : vector<16x10xf32>
    %cst_24 = arith.constant dense<0.000000e+00> : vector<16xf32>
    %36 = vector.multi_reduction <add>, %35, %cst_24 [1] : vector<16x10xf32> to vector<16xf32>
    %37 = vector.shape_cast %36 : vector<16xf32> to vector<16x1xf32>
    %38 = math.log %37 : vector<16x1xf32>
    %39 = vector.broadcast %38 : vector<16x1xf32> to vector<16x10xf32>
    %40 = arith.subf %34, %39 : vector<16x10xf32>
    %c0_25 = arith.constant 0 : index
    %c0_26 = arith.constant 0 : index
    %41 = vector.load %arg10[%c0_25, %c0_26] : memref<16x10xf32, #tpu.memory_space<vmem>>, vector<16x10xf32>
    tpu.vector_store %arg10[%c0_25, %c0_26], %40 {strides = array<i32>} : memref<16x10xf32, #tpu.memory_space<vmem>>, vector<16x10xf32>,
    return
  }
  func.func @transform_0(%arg0: i32) -> (i32, i32) {
    %c0_i32 = arith.constant 0 : i32
    %c0_i32_0 = arith.constant 0 : i32
    return %arg0, %c0_i32 : i32, i32
  }
  func.func @transform_1(%arg0: i32) -> (i32, i32) {
    %c0_i32 = arith.constant 0 : i32
    %c0_i32_0 = arith.constant 0 : i32
    %c0_i32_1 = arith.constant 0 : i32
    return %c0_i32, %c0_i32_0 : i32, i32
  }
  func.func @transform_2(%arg0: i32) -> (i32, i32) {
    %c0_i32 = arith.constant 0 : i32
    %c0_i32_0 = arith.constant 0 : i32
    %c0_i32_1 = arith.constant 0 : i32
    return %c0_i32, %c0_i32_0 : i32, i32
  }
  func.func @transform_3(%arg0: i32) -> (i32, i32) {
    %c0_i32 = arith.constant 0 : i32
    %c0_i32_0 = arith.constant 0 : i32
    %c0_i32_1 = arith.constant 0 : i32
    return %c0_i32, %c0_i32_0 : i32, i32
  }
  func.func @transform_4(%arg0: i32) -> (i32, i32) {
    %c0_i32 = arith.constant 0 : i32
    %c0_i32_0 = arith.constant 0 : i32
    %c0_i32_1 = arith.constant 0 : i32
    return %c0_i32, %c0_i32_0 : i32, i32
  }
  func.func @transform_5(%arg0: i32) -> (i32, i32) {
    %c0_i32 = arith.constant 0 : i32
    %c0_i32_0 = arith.constant 0 : i32
    %c0_i32_1 = arith.constant 0 : i32
    return %c0_i32, %c0_i32_0 : i32, i32
  }
  func.func @transform_6(%arg0: i32) -> (i32, i32) {
    %c0_i32 = arith.constant 0 : i32
    %c0_i32_0 = arith.constant 0 : i32
    %c0_i32_1 = arith.constant 0 : i32
    return %c0_i32, %c0_i32_0 : i32, i32
  }
  func.func @transform_7(%arg0: i32) -> (i32, i32) {
    %c0_i32 = arith.constant 0 : i32
    %c0_i32_0 = arith.constant 0 : i32
    %c0_i32_1 = arith.constant 0 : i32
    return %c0_i32, %c0_i32_0 : i32, i32
  }
  func.func @transform_8(%arg0: i32) -> (i32, i32) {
    %c0_i32 = arith.constant 0 : i32
    %c0_i32_0 = arith.constant 0 : i32
    %c0_i32_1 = arith.constant 0 : i32
    return %c0_i32, %c0_i32_0 : i32, i32
  }
  func.func @transform_9(%arg0: i32) -> (i32, i32) {
    %c0_i32 = arith.constant 0 : i32
    %c0_i32_0 = arith.constant 0 : i32
    return %arg0, %c0_i32 : i32, i32
  }
}

module attributes {stable_mosaic.version = 11 : i64} {
  func.func @mlp_kernel(%arg0: i32, %arg1: memref<16x784xf32, #tpu.memory_space<vmem>>, %arg2: memref<784x256xbf16, #tpu.memory_space<vmem>>, %arg3: memref<1x256xf32, #tpu.memory_space<vmem>>, %arg4: memref<256x128xbf16, #tpu.memory_space<vmem>>, %arg5: memref<1x128xf32, #tpu.memory_space<vmem>>, %arg6: memref<128x64xbf16, #tpu.memory_space<vmem>>, %arg7: memref<1x64xf32, #tpu.memory_space<vmem>>, %arg8: memref<64x10xbf16, #tpu.memory_space<vmem>>, %arg9: memref<1x10xf32, #tpu.memory_space<vmem>>, %arg10: memref<16x10xf32, #tpu.memory_space<vmem>>) attributes {dimension_semantics = [#tpu.dimension_semantics<parallel>], iteration_bounds = array<i64: 2>, scalar_prefetch = 0 : i64, scratch_operands = 0 : i64, tpu.core_type = #tpu.core_type<tc>, window_params = [{transform_indices = @transform_0, window_bounds = array<i64: 16, 784>}, {pipeline_mode = #tpu.pipeline_mode<synchronous>, transform_indices = @transform_1, window_bounds = array<i64: 784, 256>}, {pipeline_mode = #tpu.pipeline_mode<synchronous>, transform_indices = @transform_2, window_bounds = array<i64: 1, 256>}, {pipeline_mode = #tpu.pipeline_mode<synchronous>, transform_indices = @transform_3, window_bounds = array<i64: 256, 128>}, {pipeline_mode = #tpu.pipeline_mode<synchronous>, transform_indices = @transform_4, window_bounds = array<i64: 1, 128>}, {pipeline_mode = #tpu.pipeline_mode<synchronous>, transform_indices = @transform_5, window_bounds = array<i64: 128, 64>}, {pipeline_mode = #tpu.pipeline_mode<synchronous>, transform_indices = @transform_6, window_bounds = array<i64: 1, 64>}, {pipeline_mode = #tpu.pipeline_mode<synchronous>, transform_indices = @transform_7, window_bounds = array<i64: 64, 10>}, {pipeline_mode = #tpu.pipeline_mode<synchronous>, transform_indices = @transform_8, window_bounds = array<i64: 1, 10>}, {transform_indices = @transform_9, window_bounds = array<i64: 16, 10>}]} {
    %c0 = arith.constant 0 : index
    %c0_0 = arith.constant 0 : index
    %0 = vector.load %arg1[%c0, %c0_0] : memref<16x784xf32, #tpu.memory_space<vmem>>, vector<16x784xf32>
    %1 = arith.truncf %0 : vector<16x784xf32> to vector<16x784xbf16>
    %c0_1 = arith.constant 0 : index
    %c0_2 = arith.constant 0 : index
    %2 = vector.load %arg2[%c0_1, %c0_2] : memref<784x256xbf16, #tpu.memory_space<vmem>>, vector<784x256xbf16>
    %cst = arith.constant dense<0.000000e+00> : vector<16x256xf32>
    %3 = tpu.matmul %1, %2, %cst {dimension_numbers = #tpu.dot_dimension_numbers<[1], [0], [0], [1], [0, 0, 1, 1], [], []>} : vector<16x784xbf16>, vector<784x256xbf16>, vector<16x256xf32> -> vector<16x256xf32>
    %c0_3 = arith.constant 0 : index
    %c0_4 = arith.constant 0 : index
    %4 = vector.load %arg3[%c0_3, %c0_4] : memref<1x256xf32, #tpu.memory_space<vmem>>, vector<1x256xf32>
    %5 = vector.broadcast %4 : vector<1x256xf32> to vector<16x256xf32>
    %6 = arith.addf %3, %5 : vector<16x256xf32>
    %cst_5 = arith.constant 0.000000e+00 : f32
    %7 = vector.broadcast %cst_5 : f32 to vector<16x256xf32>
    %8 = arith.maximumf %6, %7 : vector<16x256xf32>
    %9 = arith.truncf %8 : vector<16x256xf32> to vector<16x256xbf16>
    %c0_6 = arith.constant 0 : index
    %c0_7 = arith.constant 0 : index
    %10 = vector.load %arg4[%c0_6, %c0_7] : memref<256x128xbf16, #tpu.memory_space<vmem>>, vector<256x128xbf16>
    %cst_8 = arith.constant dense<0.000000e+00> : vector<16x128xf32>
    %11 = tpu.matmul %9, %10, %cst_8 {dimension_numbers = #tpu.dot_dimension_numbers<[1], [0], [0], [1], [0, 0, 1, 1], [], []>} : vector<16x256xbf16>, vector<256x128xbf16>, vector<16x128xf32> -> vector<16x128xf32>
    %c0_9 = arith.constant 0 : index
    %c0_10 = arith.constant 0 : index
    %12 = vector.load %arg5[%c0_9, %c0_10] : memref<1x128xf32, #tpu.memory_space<vmem>>, vector<1x128xf32>
    %13 = vector.broadcast %12 : vector<1x128xf32> to vector<16x128xf32>
    %14 = arith.addf %11, %13 : vector<16x128xf32>
    %cst_11 = arith.constant 0.000000e+00 : f32
    %15 = vector.broadcast %cst_11 : f32 to vector<16x128xf32>
    %16 = arith.maximumf %14, %15 : vector<16x128xf32>
    %17 = arith.truncf %16 : vector<16x128xf32> to vector<16x128xbf16>
    %c0_12 = arith.constant 0 : index
    %c0_13 = arith.constant 0 : index
    %18 = vector.load %arg6[%c0_12, %c0_13] : memref<128x64xbf16, #tpu.memory_space<vmem>>, vector<128x64xbf16>
    %cst_14 = arith.constant dense<0.000000e+00> : vector<16x64xf32>
    %19 = tpu.matmul %17, %18, %cst_14 {dimension_numbers = #tpu.dot_dimension_numbers<[1], [0], [0], [1], [0, 0, 1, 1], [], []>} : vector<16x128xbf16>, vector<128x64xbf16>, vector<16x64xf32> -> vector<16x64xf32>
    %c0_15 = arith.constant 0 : index
    %c0_16 = arith.constant 0 : index
    %20 = vector.load %arg7[%c0_15, %c0_16] : memref<1x64xf32, #tpu.memory_space<vmem>>, vector<1x64xf32>
    %21 = vector.broadcast %20 : vector<1x64xf32> to vector<16x64xf32>
    %22 = arith.addf %19, %21 : vector<16x64xf32>
    %cst_17 = arith.constant 0.000000e+00 : f32
    %23 = vector.broadcast %cst_17 : f32 to vector<16x64xf32>
    %24 = arith.maximumf %22, %23 : vector<16x64xf32>
    %25 = arith.truncf %24 : vector<16x64xf32> to vector<16x64xbf16>
    %c0_18 = arith.constant 0 : index
    %c0_19 = arith.constant 0 : index
    %26 = vector.load %arg8[%c0_18, %c0_19] : memref<64x10xbf16, #tpu.memory_space<vmem>>, vector<64x10xbf16>
    %cst_20 = arith.constant dense<0.000000e+00> : vector<16x10xf32>
    %27 = tpu.matmul %25, %26, %cst_20 {dimension_numbers = #tpu.dot_dimension_numbers<[1], [0], [0], [1], [0, 0, 1, 1], [], []>} : vector<16x64xbf16>, vector<64x10xbf16>, vector<16x10xf32> -> vector<16x10xf32>
    %c0_21 = arith.constant 0 : index
    %c0_22 = arith.constant 0 : index
    %28 = vector.load %arg9[%c0_21, %c0_22] : memref<1x10xf32, #tpu.memory_space<vmem>>, vector<1x10xf32>
    %29 = vector.broadcast %28 : vector<1x10xf32> to vector<16x10xf32>
    %30 = arith.addf %27, %29 : vector<16x10xf32>
    %cst_23 = arith.constant dense<0xFF800000> : vector<16xf32>
    %31 = vector.multi_reduction <maximumf>, %30, %cst_23 [1] : vector<16x10xf32> to vector<16xf32>
    %32 = vector.shape_cast %31 : vector<16xf32> to vector<16x1xf32>
    %33 = vector.broadcast %32 : vector<16x1xf32> to vector<16x10xf32>
    %34 = arith.subf %30, %33 : vector<16x10xf32>
    %35 = math.exp %34 : vector<16x10xf32>
    %cst_24 = arith.constant dense<0.000000e+00> : vector<16xf32>
    %36 = vector.multi_reduction <add>, %35, %cst_24 [1] : vector<16x10xf32> to vector<16xf32>
    %37 = vector.shape_cast %36 : vector<16xf32> to vector<16x1xf32>
    %38 = math.log %37 : vector<16x1xf32>
    %39 = vector.broadcast %38 : vector<16x1xf32> to vector<16x10xf32>
    %40 = arith.subf %34, %39 : vector<16x10xf32>
    %c0_25 = arith.constant 0 : index
    %c0_26 = arith.constant 0 : index
    %41 = vector.load %arg10[%c0_25, %c0_26] : memref<16x10xf32, #tpu.memory_space<vmem>>, vector<16x10xf32>
    tpu.vector_store %arg10[%c0_25, %c0_26], %40 {strides = array<i32>} : memref<16x10xf32, #tpu.memory_space<vmem>>, vector<16x10xf32>,
    return
  }
  func.func @transform_0(%arg0: i32) -> (i32, i32) {
    %c0_i32 = arith.constant 0 : i32
    %c0_i32_0 = arith.constant 0 : i32
    return %arg0, %c0_i32 : i32, i32
  }
  func.func @transform_1(%arg0: i32) -> (i32, i32) {
    %c0_i32 = arith.constant 0 : i32
    %c0_i32_0 = arith.constant 0 : i32
    %c0_i32_1 = arith.constant 0 : i32
    return %c0_i32, %c0_i32_0 : i32, i32
  }
  func.func @transform_2(%arg0: i32) -> (i32, i32) {
    %c0_i32 = arith.constant 0 : i32
    %c0_i32_0 = arith.constant 0 : i32
    %c0_i32_1 = arith.constant 0 : i32
    return %c0_i32, %c0_i32_0 : i32, i32
  }
  func.func @transform_3(%arg0: i32) -> (i32, i32) {
    %c0_i32 = arith.constant 0 : i32
    %c0_i32_0 = arith.constant 0 : i32
    %c0_i32_1 = arith.constant 0 : i32
    return %c0_i32, %c0_i32_0 : i32, i32
  }
  func.func @transform_4(%arg0: i32) -> (i32, i32) {
    %c0_i32 = arith.constant 0 : i32
    %c0_i32_0 = arith.constant 0 : i32
    %c0_i32_1 = arith.constant 0 : i32
    return %c0_i32, %c0_i32_0 : i32, i32
  }
  func.func @transform_5(%arg0: i32) -> (i32, i32) {
    %c0_i32 = arith.constant 0 : i32
    %c0_i32_0 = arith.constant 0 : i32
    %c0_i32_1 = arith.constant 0 : i32
    return %c0_i32, %c0_i32_0 : i32, i32
  }
  func.func @transform_6(%arg0: i32) -> (i32, i32) {
    %c0_i32 = arith.constant 0 : i32
    %c0_i32_0 = arith.constant 0 : i32
    %c0_i32_1 = arith.constant 0 : i32
    return %c0_i32, %c0_i32_0 : i32, i32
  }
  func.func @transform_7(%arg0: i32) -> (i32, i32) {
    %c0_i32 = arith.constant 0 : i32
    %c0_i32_0 = arith.constant 0 : i32
    %c0_i32_1 = arith.constant 0 : i32
    return %c0_i32, %c0_i32_0 : i32, i32
  }
  func.func @transform_8(%arg0: i32) -> (i32, i32) {
    %c0_i32 = arith.constant 0 : i32
    %c0_i32_0 = arith.constant 0 : i32
    %c0_i32_1 = arith.constant 0 : i32
    return %c0_i32, %c0_i32_0 : i32, i32
  }
  func.func @transform_9(%arg0: i32) -> (i32, i32) {
    %c0_i32 = arith.constant 0 : i32
    %c0_i32_0 = arith.constant 0 : i32
    return %arg0, %c0_i32 : i32, i32
  }
}

</mosaic_0001>

<llo_original>
// kernel: tpu_custom_call.1
$region0: #{tpu_custom_call.1}
  #allocation0 [shape = 'u32[]', space=smem, size = 0x4, offset = 0x4, fixed_abs, tag = 'smem constant byte address 0x4 - core index']
  #allocation1 [shape = 'u32[144,128]{1,0:T(1,128)}', space=vmem, size = 0x12000, scoped, tag = 'internal scratch']
  %s0 = inlined_call_operand.hbm [shape: f32[32,784], index: 0, kind: input, shape index: {}]
  %s1 = inlined_call_operand.hbm [shape: bf16[784,256], index: 1, kind: input, shape index: {}]
  %s2 = inlined_call_operand.vmem [shape: f32[1,256], index: 2, kind: input, shape index: {}]
  %s3 = inlined_call_operand.vmem [shape: bf16[256,128], index: 3, kind: input, shape index: {}]
  %s4 = inlined_call_operand.vmem [shape: f32[1,128], index: 4, kind: input, shape index: {}]
  %s5 = inlined_call_operand.vmem [shape: bf16[128,64], index: 5, kind: input, shape index: {}]
  %s6 = inlined_call_operand.vmem [shape: f32[1,64], index: 6, kind: input, shape index: {}]
  %s7 = inlined_call_operand.vmem [shape: bf16[64,10], index: 7, kind: input, shape index: {}]
  %s8 = inlined_call_operand.vmem [shape: f32[1,10], index: 8, kind: input, shape index: {}]
  %s9 = inlined_call_operand.vmem [shape: f32[32,10], index: 9, kind: output, shape index: {}]
  %s10 = sld [smem:[#allocation0]]
  $region77: #{tpu_custom_call.1} parent=0
    _
  %s12 = ssub.s32 1, %s10
  %s13 = scalar_select 0, %s12, %s10
  $region1: #{tpu_custom_call.1} parent=0
    #allocation2 [shape = 'u8[114688]{0}', space=vmem, size = 0x1c000, scoped, tag = 'input window, operand 0']
    #allocation3 [shape = 's32[2]{0}', space=sflag, size = 0x8, scoped, tag = 'scoped memory for tpu_custom_call.1']
    #allocation4 [shape = 'u8[401408]{0}', space=vmem, size = 0x62000, scoped, tag = 'input window, operand 1, single buffered']
    #allocation5 [shape = 's32[1]{0}', space=sflag, size = 0x4, scoped, tag = 'scoped memory for tpu_custom_call.1']
    %14 = vsyncpa [#allocation3], 0
    %s15 = scalar_lea.sflag [#allocation3], 1
    %16 = vsyncpa %s15, 0
    %17 = vsyncpa [#allocation5], 0
    loop: start=0, step=1, limit=4
    $region2: #{tpu_custom_call.1} parent=1 // loop_pre_header
      _
    $region3: #{tpu_custom_call.1} parent=1 // loop_header
      %s19 = sphi 0, %s23
      %p20 = scmp.ge.s32.totalorder %s19, 4
      %s29 = sphi 0, %s31
      %s32 = sphi 0, %s29
      %s33 = sphi 0, %s32
      %s49 = sphi 0, %s33
      %s53 = sphi 0, %s53
      %s55 = sphi 0, %s53
      %s56 = sphi 0, %s55
      %s70 = sphi 0, %s56
      %s74 = sphi 0, %s74
      %s76 = sphi 0, %s74
      %s77 = sphi 0, %s76
      %s91 = sphi 0, %s77
      %s95 = sphi 0, %s95
      %s97 = sphi 0, %s95
      %s98 = sphi 0, %s97
      %s112 = sphi 0, %s98
      %s116 = sphi 0, %s116
      %s118 = sphi 0, %s116
      %s119 = sphi 0, %s118
      %s133 = sphi 0, %s119
      %s137 = sphi 0, %s137
      %s139 = sphi 0, %s137
      %s140 = sphi 0, %s139
      %s154 = sphi 0, %s140
      %s158 = sphi 0, %s158
      %s160 = sphi 0, %s158
      %s161 = sphi 0, %s160
      %s175 = sphi 0, %s161
      %s179 = sphi 0, %s179
      %s181 = sphi 0, %s179
      %s182 = sphi 0, %s181
      %s196 = sphi 0, %s182
      %s200 = sphi 0, %s200
      %s202 = sphi 0, %s200
      %s203 = sphi 0, %s202
      %s217 = sphi 0, %s203
      %s223 = sphi 0, %s225
      %s226 = sphi 0, %s223
      %s227 = sphi 0, %s226
      %s243 = sphi 0, %s227
    $region4: #{tpu_custom_call.1} parent=1 // loop_header_branch
      %22 = sbr.rel (%p20) target = $region8
    $region5: #{tpu_custom_call.1} parent=1 // loop_body
      %s24 = ssub.s32 %s19, 1
      %s25 = ssub.s32 %s19, 2
      %s26 = sadd.s32 %s19, 1
      %s27 = ssub.s32 %s19, %s26
      %p28 = scmp.eq.s32.totalorder %s27, 0
      %s30 = sadd.s32 %s29, 1
      %s31 = scalar_select %p28, %s29, %s30
      %p34 = pneg %p28
      %p35 = scmp.eq.s32.totalorder %s19, 1
      %p36 = por %p34, %p35
      %p37 = scmp.ne.s32.totalorder %s29, %s32
      %p38 = scmp.eq.s32.totalorder %s19, 0
      %p39 = por %p37, %p38
      %p40 = scmp.ne.s32.totalorder %s29, %s32
      %p41 = scmp.eq.s32.totalorder %s24, 1
      %p42 = por %p40, %p41
      %p43 = scmp.ne.s32.totalorder %s32, %s33
      %p44 = scmp.eq.s32.totalorder %s24, 0
      %p45 = por %p43, %p44
      %p46 = scmp.ne.s32.totalorder %s32, %s33
      %p47 = scmp.eq.s32.totalorder %s25, 1
      %p48 = por %p46, %p47
      %p50 = scmp.ne.s32.totalorder %s33, %s49
      %p51 = scmp.eq.s32.totalorder %s25, 0
      %p52 = por %p50, %p51
      %s54 = sadd.s32 %s53, 1
      %p57 = scmp.eq.s32.totalorder %s19, 1
      %p58 = scmp.ne.s32.totalorder %s53, %s55
      %p59 = scmp.eq.s32.totalorder %s19, 0
      %p60 = por %p58, %p59
      %p61 = scmp.ne.s32.totalorder %s53, %s55
      %p62 = scmp.eq.s32.totalorder %s24, 1
      %p63 = por %p61, %p62
      %p64 = scmp.ne.s32.totalorder %s55, %s56
      %p65 = scmp.eq.s32.totalorder %s24, 0
      %p66 = por %p64, %p65
      %p67 = scmp.ne.s32.totalorder %s55, %s56
      %p68 = scmp.eq.s32.totalorder %s25, 1
      %p69 = por %p67, %p68
      %p71 = scmp.ne.s32.totalorder %s56, %s70
      %p72 = scmp.eq.s32.totalorder %s25, 0
      %p73 = por %p71, %p72
      %s75 = sadd.s32 %s74, 1
      %p78 = scmp.eq.s32.totalorder %s19, 1
      %p79 = scmp.ne.s32.totalorder %s74, %s76
      %p80 = scmp.eq.s32.totalorder %s19, 0
      %p81 = por %p79, %p80
      %p82 = scmp.ne.s32.totalorder %s74, %s76
      %p83 = scmp.eq.s32.totalorder %s24, 1
      %p84 = por %p82, %p83
      %p85 = scmp.ne.s32.totalorder %s76, %s77
      %p86 = scmp.eq.s32.totalorder %s24, 0
      %p87 = por %p85, %p86
      %p88 = scmp.ne.s32.totalorder %s76, %s77
      %p89 = scmp.eq.s32.totalorder %s25, 1
      %p90 = por %p88, %p89
      %p92 = scmp.ne.s32.totalorder %s77, %s91
      %p93 = scmp.eq.s32.totalorder %s25, 0
      %p94 = por %p92, %p93
      %s96 = sadd.s32 %s95, 1
      %p99 = scmp.eq.s32.totalorder %s19, 1
      %p100 = scmp.ne.s32.totalorder %s95, %s97
      %p101 = scmp.eq.s32.totalorder %s19, 0
      %p102 = por %p100, %p101
      %p103 = scmp.ne.s32.totalorder %s95, %s97
      %p104 = scmp.eq.s32.totalorder %s24, 1
      %p105 = por %p103, %p104
      %p106 = scmp.ne.s32.totalorder %s97, %s98
      %p107 = scmp.eq.s32.totalorder %s24, 0
      %p108 = por %p106, %p107
      %p109 = scmp.ne.s32.totalorder %s97, %s98
      %p110 = scmp.eq.s32.totalorder %s25, 1
      %p111 = por %p109, %p110
      %p113 = scmp.ne.s32.totalorder %s98, %s112
      %p114 = scmp.eq.s32.totalorder %s25, 0
      %p115 = por %p113, %p114
      %s117 = sadd.s32 %s116, 1
      %p120 = scmp.eq.s32.totalorder %s19, 1
      %p121 = scmp.ne.s32.totalorder %s116, %s118
      %p122 = scmp.eq.s32.totalorder %s19, 0
      %p123 = por %p121, %p122
      %p124 = scmp.ne.s32.totalorder %s116, %s118
      %p125 = scmp.eq.s32.totalorder %s24, 1
      %p126 = por %p124, %p125
      %p127 = scmp.ne.s32.totalorder %s118, %s119
      %p128 = scmp.eq.s32.totalorder %s24, 0
      %p129 = por %p127, %p128
      %p130 = scmp.ne.s32.totalorder %s118, %s119
      %p131 = scmp.eq.s32.totalorder %s25, 1
      %p132 = por %p130, %p131
      %p134 = scmp.ne.s32.totalorder %s119, %s133
      %p135 = scmp.eq.s32.totalorder %s25, 0
      %p136 = por %p134, %p135
      %s138 = sadd.s32 %s137, 1
      %p141 = scmp.eq.s32.totalorder %s19, 1
      %p142 = scmp.ne.s32.totalorder %s137, %s139
      %p143 = scmp.eq.s32.totalorder %s19, 0
      %p144 = por %p142, %p143
      %p145 = scmp.ne.s32.totalorder %s137, %s139
      %p146 = scmp.eq.s32.totalorder %s24, 1
      %p147 = por %p145, %p146
      %p148 = scmp.ne.s32.totalorder %s139, %s140
      %p149 = scmp.eq.s32.totalorder %s24, 0
      %p150 = por %p148, %p149
      %p151 = scmp.ne.s32.totalorder %s139, %s140
      %p152 = scmp.eq.s32.totalorder %s25, 1
      %p153 = por %p151, %p152
      %p155 = scmp.ne.s32.totalorder %s140, %s154
      %p156 = scmp.eq.s32.totalorder %s25, 0
      %p157 = por %p155, %p156
      %s159 = sadd.s32 %s158, 1
      %p162 = scmp.eq.s32.totalorder %s19, 1
      %p163 = scmp.ne.s32.totalorder %s158, %s160
      %p164 = scmp.eq.s32.totalorder %s19, 0
      %p165 = por %p163, %p164
      %p166 = scmp.ne.s32.totalorder %s158, %s160
      %p167 = scmp.eq.s32.totalorder %s24, 1
      %p168 = por %p166, %p167
      %p169 = scmp.ne.s32.totalorder %s160, %s161
      %p170 = scmp.eq.s32.totalorder %s24, 0
      %p171 = por %p169, %p170
      %p172 = scmp.ne.s32.totalorder %s160, %s161
      %p173 = scmp.eq.s32.totalorder %s25, 1
      %p174 = por %p172, %p173
      %p176 = scmp.ne.s32.totalorder %s161, %s175
      %p177 = scmp.eq.s32.totalorder %s25, 0
      %p178 = por %p176, %p177
      %s180 = sadd.s32 %s179, 1
      %p183 = scmp.eq.s32.totalorder %s19, 1
      %p184 = scmp.ne.s32.totalorder %s179, %s181
      %p185 = scmp.eq.s32.totalorder %s19, 0
      %p186 = por %p184, %p185
      %p187 = scmp.ne.s32.totalorder %s179, %s181
      %p188 = scmp.eq.s32.totalorder %s24, 1
      %p189 = por %p187, %p188
      %p190 = scmp.ne.s32.totalorder %s181, %s182
      %p191 = scmp.eq.s32.totalorder %s24, 0
      %p192 = por %p190, %p191
      %p193 = scmp.ne.s32.totalorder %s181, %s182
      %p194 = scmp.eq.s32.totalorder %s25, 1
      %p195 = por %p193, %p194
      %p197 = scmp.ne.s32.totalorder %s182, %s196
      %p198 = scmp.eq.s32.totalorder %s25, 0
      %p199 = por %p197, %p198
      %s201 = sadd.s32 %s200, 1
      %p204 = scmp.eq.s32.totalorder %s19, 1
      %p205 = scmp.ne.s32.totalorder %s200, %s202
      %p206 = scmp.eq.s32.totalorder %s19, 0
      %p207 = por %p205, %p206
      %p208 = scmp.ne.s32.totalorder %s200, %s202
      %p209 = scmp.eq.s32.totalorder %s24, 1
      %p210 = por %p208, %p209
      %p211 = scmp.ne.s32.totalorder %s202, %s203
      %p212 = scmp.eq.s32.totalorder %s24, 0
      %p213 = por %p211, %p212
      %p214 = scmp.ne.s32.totalorder %s202, %s203
      %p215 = scmp.eq.s32.totalorder %s25, 1
      %p216 = por %p214, %p215
      %p218 = scmp.ne.s32.totalorder %s203, %s217
      %p219 = scmp.eq.s32.totalorder %s25, 0
      %p220 = por %p218, %p219
      %s221 = ssub.s32 %s19, %s26
      %p222 = scmp.eq.s32.totalorder %s221, 0
      %s224 = sadd.s32 %s223, 1
      %s225 = scalar_select %p222, %s223, %s224
      %p228 = pneg %p222
      %p229 = scmp.eq.s32.totalorder %s19, 1
      %p230 = por %p228, %p229
      %p231 = scmp.ne.s32.totalorder %s223, %s226
      %p232 = scmp.eq.s32.totalorder %s19, 0
      %p233 = por %p231, %p232
      %p234 = scmp.ne.s32.totalorder %s223, %s226
      %p235 = scmp.eq.s32.totalorder %s24, 1
      %p236 = por %p234, %p235
      %p237 = scmp.ne.s32.totalorder %s226, %s227
      %p238 = scmp.eq.s32.totalorder %s24, 0
      %p239 = por %p237, %p238
      %p240 = scmp.ne.s32.totalorder %s226, %s227
      %p241 = scmp.eq.s32.totalorder %s25, 1
      %p242 = por %p240, %p241
      %p244 = scmp.ne.s32.totalorder %s227, %s243
      %p245 = scmp.eq.s32.totalorder %s25, 0
      %p246 = por %p244, %p245
      %p247 = scmp.le.s32.totalorder 1, %s19
      %p248 = scmp.lt.s32.totalorder %s19, 3
      %p249 = pnand %p247, %p248
      %p250 = pneg %p249
      // Predicated region
      $region9: #{tpu_custom_call.1} parent=5 // pred_check
        _
      $region10: #{tpu_custom_call.1} parent=5 // pred_check_branch
        %252 = sbr.rel (%p249) target = $region12
      $region11: #{tpu_custom_call.1} parent=5 // pred_region
        %s253 = ssub.s32 %s19, 1
        // Predicated region
        $region13: #{tpu_custom_call.1} parent=11 // pred_check
          %p254 = pneg %p66
        $region14: #{tpu_custom_call.1} parent=11 // pred_check_branch
          %256 = sbr.rel (%p254) target = $region16
        $region15: #{tpu_custom_call.1} parent=11 // pred_region
          %s258 = ssub.s32 12544, 12544
          %259 = vsyncadd [#allocation5], %s258
          %s260 = sshll.u32 [#allocation4], 4
          %s261 = int_to_ptr.vmem [resolvable:$true] %s260
          %266 = dma.hbm_to_vmem [thread:$0]  %s1, 12544, %s261, [#allocation5], 128, 128, 8
        $region16: #{tpu_custom_call.1} parent=11 // pred_fallthru
          _
        // Predicated region
        $region17: #{tpu_custom_call.1} parent=11 // pred_check
          %p267 = pneg %p87
        $region18: #{tpu_custom_call.1} parent=11 // pred_check_branch
          %269 = sbr.rel (%p267) target = $region20
        $region19: #{tpu_custom_call.1} parent=11 // pred_region
          _
        $region20: #{tpu_custom_call.1} parent=11 // pred_fallthru
          _
        // Predicated region
        $region21: #{tpu_custom_call.1} parent=11 // pred_check
          %p270 = pneg %p108
        $region22: #{tpu_custom_call.1} parent=11 // pred_check_branch
          %272 = sbr.rel (%p270) target = $region24
        $region23: #{tpu_custom_call.1} parent=11 // pred_region
          _
        $region24: #{tpu_custom_call.1} parent=11 // pred_fallthru
          _
        // Predicated region
        $region25: #{tpu_custom_call.1} parent=11 // pred_check
          %p273 = pneg %p129
        $region26: #{tpu_custom_call.1} parent=11 // pred_check_branch
          %275 = sbr.rel (%p273) target = $region28
        $region27: #{tpu_custom_call.1} parent=11 // pred_region
          _
        $region28: #{tpu_custom_call.1} parent=11 // pred_fallthru
          _
        // Predicated region
        $region29: #{tpu_custom_call.1} parent=11 // pred_check
          %p276 = pneg %p150
        $region30: #{tpu_custom_call.1} parent=11 // pred_check_branch
          %278 = sbr.rel (%p276) target = $region32
        $region31: #{tpu_custom_call.1} parent=11 // pred_region
          _
        $region32: #{tpu_custom_call.1} parent=11 // pred_fallthru
          _
        // Predicated region
        $region33: #{tpu_custom_call.1} parent=11 // pred_check
          %p279 = pneg %p171
        $region34: #{tpu_custom_call.1} parent=11 // pred_check_branch
          %281 = sbr.rel (%p279) target = $region36
        $region35: #{tpu_custom_call.1} parent=11 // pred_region
          _
        $region36: #{tpu_custom_call.1} parent=11 // pred_fallthru
          _
        // Predicated region
        $region37: #{tpu_custom_call.1} parent=11 // pred_check
          %p282 = pneg %p192
        $region38: #{tpu_custom_call.1} parent=11 // pred_check_branch
          %284 = sbr.rel (%p282) target = $region40
        $region39: #{tpu_custom_call.1} parent=11 // pred_region
          _
        $region40: #{tpu_custom_call.1} parent=11 // pred_fallthru
          _
        // Predicated region
        $region41: #{tpu_custom_call.1} parent=11 // pred_check
          %p285 = pneg %p213
        $region42: #{tpu_custom_call.1} parent=11 // pred_check_branch
          %287 = sbr.rel (%p285) target = $region44
        $region43: #{tpu_custom_call.1} parent=11 // pred_region
          _
        $region44: #{tpu_custom_call.1} parent=11 // pred_fallthru
          _
      $region12: #{tpu_custom_call.1} parent=5 // pred_fallthru
        _
      %p288 = scmp.lt.s32.totalorder %s19, 2
      // Predicated region
      $region45: #{tpu_custom_call.1} parent=5 // pred_check
        %p289 = pneg %p288
      $region46: #{tpu_custom_call.1} parent=5 // pred_check_branch
        %291 = sbr.rel (%p289) target = $region48
      $region47: #{tpu_custom_call.1} parent=5 // pred_region
        // Predicated region
        $region49: #{tpu_custom_call.1} parent=47 // pred_check
          %p292 = pneg %p39
        $region50: #{tpu_custom_call.1} parent=47 // pred_check_branch
          %294 = sbr.rel (%p292) target = $region52
        $region51: #{tpu_custom_call.1} parent=47 // pred_region
          %s295 = sand.u32 %s29, 1
          %s296 = scalar_lea.sflag [#allocation3], %s295
          %s297 = sand.u32 %s29, 1
          %s298 = smul.addr %s297, 112
          %s299 = scalar_lea.vmem [#allocation2], %s298
          %s300 = smul.u32 2, %s19
          %s302 = ssub.s32 1792, 1792
          %303 = vsyncadd %s296, %s302
          %s304 = smul.addr %s300, 7
          %s305 = smul.addr %s304, 128
          %s306 = scalar_lea.hbm %s0, %s305
          %s307 = sshll.u32 %s299, 4
          %s308 = int_to_ptr.vmem [resolvable:$true] %s307
          %313 = dma.hbm_to_vmem [thread:$0]  %s306, 1792, %s308, %s296, 896, 896, 56
        $region52: #{tpu_custom_call.1} parent=47 // pred_fallthru
          _
      $region48: #{tpu_custom_call.1} parent=5 // pred_fallthru
        _
      %p314 = scmp.le.s32.totalorder 1, %s19
      %p315 = scmp.lt.s32.totalorder %s19, 3
      %p316 = pnand %p314, %p315
      %p317 = pneg %p316
      // Predicated region
      $region53: #{tpu_custom_call.1} parent=5 // pred_check
        _
      $region54: #{tpu_custom_call.1} parent=5 // pred_check_branch
        %319 = sbr.rel (%p316) target = $region56
      $region55: #{tpu_custom_call.1} parent=5 // pred_region
        %s320 = ssub.s32 %s19, 1
        %s321 = sand.u32 %s32, 1
        %s322 = scalar_lea.sflag [#allocation3], %s321
        %s323 = sand.u32 %s32, 1
        %s324 = smul.addr %s323, 112
        %s325 = scalar_lea.vmem [#allocation2], %s324
        // Predicated region
        $region57: #{tpu_custom_call.1} parent=55 // pred_check
          %p326 = pneg %p45
        $region58: #{tpu_custom_call.1} parent=55 // pred_check_branch
          %328 = sbr.rel (%p326) target = $region60
        $region59: #{tpu_custom_call.1} parent=55 // pred_region
          %329 = dma.done %s322, 1792
        $region60: #{tpu_custom_call.1} parent=55 // pred_fallthru
          _
        // Predicated region
        $region61: #{tpu_custom_call.1} parent=55 // pred_check
          %p330 = pneg %p66
        $region62: #{tpu_custom_call.1} parent=55 // pred_check_branch
          %332 = sbr.rel (%p330) target = $region64
        $region63: #{tpu_custom_call.1} parent=55 // pred_region
          %333 = dma.done [#allocation5], 12544
        $region64: #{tpu_custom_call.1} parent=55 // pred_fallthru
          _
        %s334 = sand.u32 %s32, 1
        %s335 = scalar_lea.sflag [#allocation3], %s334
        %s336 = sand.u32 %s32, 1
        %s337 = smul.addr %s336, 112
        %s338 = scalar_lea.vmem [#allocation2], %s337
        %p339 = pneg %p45
        %p340 = pneg %p42
        %p341 = pneg %p66
        %p342 = pneg %p63
        %p343 = pneg %p87
        %p344 = pneg %p84
        %p345 = pneg %p108
        %p346 = pneg %p105
        %p347 = pneg %p129
        %p348 = pneg %p126
        %p349 = pneg %p150
        %p350 = pneg %p147
        %p351 = pneg %p171
        %p352 = pneg %p168
        %p353 = pneg %p192
        %p354 = pneg %p189
        %p355 = pneg %p213
        %p356 = pneg %p210
        %p357 = pneg %p239
        %p358 = pneg %p236
        %s359 = smul.u32 2, %s24
        %p360 = scmp.lt.s32.totalorder %s359, 3
        %s361 = scalar_select %p360, %s359, 3
        %s362 = smul.addr %s361, 8
        %s363 = scalar_lea.vmem %s9, %s362
        %s364 = smul.u32 2, %s24
        %s365 = smul.u32 2, %s24
        %p366 = scmp.lt.s32.totalorder %s365, 3
        %s367 = scalar_select %p366, %s365, 3
        %s368 = smul.addr %s367, 8
        %s369 = scalar_lea.vmem %s9, %s368
        %s370 = smul.u32 2, %s24
        %v372 = vld [vmem:[%s325] sm:$0xff]
        %v373 = vld [vmem:[%s325 + $0x8] sm:$0xff]
        %v374 = vld [vmem:[%s325 + $0x10] sm:$0xff]
        %v375 = vld [vmem:[%s325 + $0x18] sm:$0xff]
        %v376 = vld [vmem:[%s325 + $0x20] sm:$0xff]
        %v377 = vld [vmem:[%s325 + $0x28] sm:$0xff]
        %v378 = vld [vmem:[%s325 + $0x30] sm:$0xff]
        %v379 = vld [vmem:[%s325 + $0x38] sm:$0xff]
        %v380 = vld [vmem:[%s325 + $0x40] sm:$0xff]
        %v381 = vld [vmem:[%s325 + $0x48] sm:$0xff]
        %v382 = vld [vmem:[%s325 + $0x50] sm:$0xff]
        %v383 = vld [vmem:[%s325 + $0x58] sm:$0xff]
        %v384 = vld [vmem:[%s325 + $0x60] sm:$0xff]
        %v385 = vld [vmem:[%s325 + $0x68] sm:$0xff]
        %v386 = vpack.c.bf16 %v379, %v372
        %v387 = vpack.c.bf16 %v380, %v373
        %v388 = vpack.c.bf16 %v381, %v374
        %v389 = vpack.c.bf16 %v382, %v375
        %v390 = vpack.c.bf16 %v383, %v376
        %v391 = vpack.c.bf16 %v384, %v377
        %v392 = vpack.c.bf16 %v385, %v378
        %v393 = vld [vmem:[#allocation4] sm:$0xff]
        %v394 = vld [vmem:[#allocation4 + $0x8] sm:$0xff]
        %v395 = vld [vmem:[#allocation4 + $0x10] sm:$0xff]
        %v396 = vld [vmem:[#allocation4 + $0x18] sm:$0xff]
        %v397 = vld [vmem:[#allocation4 + $0x20] sm:$0xff]
        %v398 = vld [vmem:[#allocation4 + $0x28] sm:$0xff]
        %v399 = vld [vmem:[#allocation4 + $0x30] sm:$0xff]
        %v400 = vld [vmem:[#allocation4 + $0x38] sm:$0xff]
        %v401 = vld [vmem:[#allocation4 + $0x40] sm:$0xff]
        %v402 = vld [vmem:[#allocation4 + $0x48] sm:$0xff]
        %v403 = vld [vmem:[#allocation4 + $0x50] sm:$0xff]
        %v404 = vld [vmem:[#allocation4 + $0x58] sm:$0xff]
        %v405 = vld [vmem:[#allocation4 + $0x60] sm:$0xff]
        %v406 = vld [vmem:[#allocation4 + $0x68] sm:$0xff]
        %v407 = vld [vmem:[#allocation4 + $0x70] sm:$0xff]
        %v408 = vld [vmem:[#allocation4 + $0x78] sm:$0xff]
        %v409 = vld [vmem:[#allocation4 + $0x80] sm:$0xff]
        %v410 = vld [vmem:[#allocation4 + $0x88] sm:$0xff]
        %v411 = vld [vmem:[#allocation4 + $0x90] sm:$0xff]
        %v412 = vld [vmem:[#allocation4 + $0x98] sm:$0xff]
        %v413 = vld [vmem:[#allocation4 + $0xa0] sm:$0xff]
        %v414 = vld [vmem:[#allocation4 + $0xa8] sm:$0xff]
        %v415 = vld [vmem:[#allocation4 + $0xb0] sm:$0xff]
        %v416 = vld [vmem:[#allocation4 + $0xb8] sm:$0xff]
        %v417 = vld [vmem:[#allocation4 + $0xc0] sm:$0xff]
        %v418 = vld [vmem:[#allocation4 + $0xc8] sm:$0xff]
        %v419 = vld [vmem:[#allocation4 + $0xd0] sm:$0xff]
        %v420 = vld [vmem:[#allocation4 + $0xd8] sm:$0xff]
        %v421 = vld [vmem:[#allocation4 + $0xe0] sm:$0xff]
        %v422 = vld [vmem:[#allocation4 + $0xe8] sm:$0xff]
        %v423 = vld [vmem:[#allocation4 + $0xf0] sm:$0xff]
        %v424 = vld [vmem:[#allocation4 + $0xf8] sm:$0xff]
        %v425 = vld [vmem:[#allocation4 + $0x100] sm:$0xff]
        %v426 = vld [vmem:[#allocation4 + $0x108] sm:$0xff]
        %v427 = vld [vmem:[#allocation4 + $0x110] sm:$0xff]
        %v428 = vld [vmem:[#allocation4 + $0x118] sm:$0xff]
        %v429 = vld [vmem:[#allocation4 + $0x120] sm:$0xff]
        %v430 = vld [vmem:[#allocation4 + $0x128] sm:$0xff]
        %v431 = vld [vmem:[#allocation4 + $0x130] sm:$0xff]
        %v432 = vld [vmem:[#allocation4 + $0x138] sm:$0xff]
        %v433 = vld [vmem:[#allocation4 + $0x140] sm:$0xff]
        %v434 = vld [vmem:[#allocation4 + $0x148] sm:$0xff]
        %v435 = vld [vmem:[#allocation4 + $0x150] sm:$0xff]
        %v436 = vld [vmem:[#allocation4 + $0x158] sm:$0xff]
        %v437 = vld [vmem:[#allocation4 + $0x160] sm:$0xff]
        %v438 = vld [vmem:[#allocation4 + $0x168] sm:$0xff]
        %v439 = vld [vmem:[#allocation4 + $0x170] sm:$0xff]
        %v440 = vld [vmem:[#allocation4 + $0x178] sm:$0xff]
        %v441 = vld [vmem:[#allocation4 + $0x180] sm:$0xff]
        %v442 = vld [vmem:[#allocation4 + $0x188] sm:$0xff]
        %v443 = vld [vmem:[#allocation4 + $0x190] sm:$0xff]
        %v444 = vld [vmem:[#allocation4 + $0x198] sm:$0xff]
        %v445 = vld [vmem:[#allocation4 + $0x1a0] sm:$0xff]
        %v446 = vld [vmem:[#allocation4 + $0x1a8] sm:$0xff]
        %v447 = vld [vmem:[#allocation4 + $0x1b0] sm:$0xff]
        %v448 = vld [vmem:[#allocation4 + $0x1b8] sm:$0xff]
        %v449 = vld [vmem:[#allocation4 + $0x1c0] sm:$0xff]
        %v450 = vld [vmem:[#allocation4 + $0x1c8] sm:$0xff]
        %v451 = vld [vmem:[#allocation4 + $0x1d0] sm:$0xff]
        %v452 = vld [vmem:[#allocation4 + $0x1d8] sm:$0xff]
        %v453 = vld [vmem:[#allocation4 + $0x1e0] sm:$0xff]
        %v454 = vld [vmem:[#allocation4 + $0x1e8] sm:$0xff]
        %v455 = vld [vmem:[#allocation4 + $0x1f0] sm:$0xff]
        %v456 = vld [vmem:[#allocation4 + $0x1f8] sm:$0xff]
        %v457 = vld [vmem:[#allocation4 + $0x200] sm:$0xff]
        %v458 = vld [vmem:[#allocation4 + $0x208] sm:$0xff]
        %v459 = vld [vmem:[#allocation4 + $0x210] sm:$0xff]
        %v460 = vld [vmem:[#allocation4 + $0x218] sm:$0xff]
        %v461 = vld [vmem:[#allocation4 + $0x220] sm:$0xff]
        %v462 = vld [vmem:[#allocation4 + $0x228] sm:$0xff]
        %v463 = vld [vmem:[#allocation4 + $0x230] sm:$0xff]
        %v464 = vld [vmem:[#allocation4 + $0x238] sm:$0xff]
        %v465 = vld [vmem:[#allocation4 + $0x240] sm:$0xff]
        %v466 = vld [vmem:[#allocation4 + $0x248] sm:$0xff]
        %v467 = vld [vmem:[#allocation4 + $0x250] sm:$0xff]
        %v468 = vld [vmem:[#allocation4 + $0x258] sm:$0xff]
        %v469 = vld [vmem:[#allocation4 + $0x260] sm:$0xff]
        %v470 = vld [vmem:[#allocation4 + $0x268] sm:$0xff]
        %v471 = vld [vmem:[#allocation4 + $0x270] sm:$0xff]
        %v472 = vld [vmem:[#allocation4 + $0x278] sm:$0xff]
        %v473 = vld [vmem:[#allocation4 + $0x280] sm:$0xff]
        %v474 = vld [vmem:[#allocation4 + $0x288] sm:$0xff]
        %v475 = vld [vmem:[#allocation4 + $0x290] sm:$0xff]
        %v476 = vld [vmem:[#allocation4 + $0x298] sm:$0xff]
        %v477 = vld [vmem:[#allocation4 + $0x2a0] sm:$0xff]
        %v478 = vld [vmem:[#allocation4 + $0x2a8] sm:$0xff]
        %v479 = vld [vmem:[#allocation4 + $0x2b0] sm:$0xff]
        %v480 = vld [vmem:[#allocation4 + $0x2b8] sm:$0xff]
        %v481 = vld [vmem:[#allocation4 + $0x2c0] sm:$0xff]
        %v482 = vld [vmem:[#allocation4 + $0x2c8] sm:$0xff]
        %v483 = vld [vmem:[#allocation4 + $0x2d0] sm:$0xff]
        %v484 = vld [vmem:[#allocation4 + $0x2d8] sm:$0xff]
        %v485 = vld [vmem:[#allocation4 + $0x2e0] sm:$0xff]
        %v486 = vld [vmem:[#allocation4 + $0x2e8] sm:$0xff]
        %v487 = vld [vmem:[#allocation4 + $0x2f0] sm:$0xff]
        %v488 = vld [vmem:[#allocation4 + $0x2f8] sm:$0xff]
        %v489 = vld [vmem:[#allocation4 + $0x300] sm:$0xff]
        %v490 = vld [vmem:[#allocation4 + $0x308] sm:$0xff]
        %v491 = vld [vmem:[%s2] sm:$0x3]
        %v493 = vlaneseq
        %v494 = vshrl.u32 %v493, 7
        %v495 = vsub.s32 0, %v494
        %v496 = vrot.slane %v491, %v495
        %v497 = vlaneseq
        %v498 = vshrl.u32 %v497, 7
        %v499 = vsub.s32 1, %v498
        %v500 = vrot.slane %v491, %v499
        %v601 = vunpack.c.l.b16 %v393
        %v602 = vunpack.c.h.b16 %v393
        %v603 = vunpack.c.l.b16 %v394
        %v604 = vunpack.c.h.b16 %v394
        %v605 = vunpack.c.l.b16 %v395
        %v606 = vunpack.c.h.b16 %v395
        %v607 = vunpack.c.l.b16 %v396
        %v608 = vunpack.c.h.b16 %v396
        %v609 = vunpack.c.l.b16 %v397
        %v610 = vunpack.c.h.b16 %v397
        %v611 = vunpack.c.l.b16 %v398
        %v612 = vunpack.c.h.b16 %v398
        %v613 = vunpack.c.l.b16 %v399
        %v614 = vunpack.c.h.b16 %v399
        %v615 = vunpack.c.l.b16 %v400
        %v616 = vunpack.c.h.b16 %v400
        %v617 = vunpack.c.l.b16 %v401
        %v618 = vunpack.c.h.b16 %v401
        %v619 = vunpack.c.l.b16 %v402
        %v620 = vunpack.c.h.b16 %v402
        %v621 = vunpack.c.l.b16 %v403
        %v622 = vunpack.c.h.b16 %v403
        %v623 = vunpack.c.l.b16 %v404
        %v624 = vunpack.c.h.b16 %v404
        %v625 = vunpack.c.l.b16 %v405
        %v626 = vunpack.c.h.b16 %v405
        %v627 = vunpack.c.l.b16 %v406
        %v628 = vunpack.c.h.b16 %v406
        %v629 = vunpack.c.l.b16 %v407
        %v630 = vunpack.c.h.b16 %v407
        %v631 = vunpack.c.l.b16 %v408
        %v632 = vunpack.c.h.b16 %v408
        %v633 = vunpack.c.l.b16 %v409
        %v634 = vunpack.c.h.b16 %v409
        %v635 = vunpack.c.l.b16 %v410
        %v636 = vunpack.c.h.b16 %v410
        %v637 = vunpack.c.l.b16 %v411
        %v638 = vunpack.c.h.b16 %v411
        %v639 = vunpack.c.l.b16 %v412
        %v640 = vunpack.c.h.b16 %v412
        %v641 = vunpack.c.l.b16 %v413
        %v642 = vunpack.c.h.b16 %v413
        %v643 = vunpack.c.l.b16 %v414
        %v644 = vunpack.c.h.b16 %v414
        %v645 = vunpack.c.l.b16 %v415
        %v646 = vunpack.c.h.b16 %v415
        %v647 = vunpack.c.l.b16 %v416
        %v648 = vunpack.c.h.b16 %v416
        %v649 = vunpack.c.l.b16 %v417
        %v650 = vunpack.c.h.b16 %v417
        %v651 = vunpack.c.l.b16 %v418
        %v652 = vunpack.c.h.b16 %v418
        %v653 = vunpack.c.l.b16 %v419
        %v654 = vunpack.c.h.b16 %v419
        %v655 = vunpack.c.l.b16 %v420
        %v656 = vunpack.c.h.b16 %v420
        %v657 = vunpack.c.l.b16 %v421
        %v658 = vunpack.c.h.b16 %v421
        %v659 = vunpack.c.l.b16 %v422
        %v660 = vunpack.c.h.b16 %v422
        %v661 = vunpack.c.l.b16 %v423
        %v662 = vunpack.c.h.b16 %v423
        %v663 = vunpack.c.l.b16 %v424
        %v664 = vunpack.c.h.b16 %v424
        %v665 = vunpack.c.l.b16 %v425
        %v666 = vunpack.c.h.b16 %v425
        %v667 = vunpack.c.l.b16 %v426
        %v668 = vunpack.c.h.b16 %v426
        %v669 = vunpack.c.l.b16 %v427
        %v670 = vunpack.c.h.b16 %v427
        %v671 = vunpack.c.l.b16 %v428
        %v672 = vunpack.c.h.b16 %v428
        %v673 = vunpack.c.l.b16 %v429
        %v674 = vunpack.c.h.b16 %v429
        %v675 = vunpack.c.l.b16 %v430
        %v676 = vunpack.c.h.b16 %v430
        %v677 = vunpack.c.l.b16 %v431
        %v678 = vunpack.c.h.b16 %v431
        %v679 = vunpack.c.l.b16 %v432
        %v680 = vunpack.c.h.b16 %v432
        %v681 = vunpack.c.l.b16 %v433
        %v682 = vunpack.c.h.b16 %v433
        %v683 = vunpack.c.l.b16 %v434
        %v684 = vunpack.c.h.b16 %v434
        %v685 = vunpack.c.l.b16 %v435
        %v686 = vunpack.c.h.b16 %v435
        %v687 = vunpack.c.l.b16 %v436
        %v688 = vunpack.c.h.b16 %v436
        %v689 = vunpack.c.l.b16 %v437
        %v690 = vunpack.c.h.b16 %v437
        %v691 = vunpack.c.l.b16 %v438
        %v692 = vunpack.c.h.b16 %v438
        %v693 = vunpack.c.l.b16 %v439
        %v694 = vunpack.c.h.b16 %v439
        %v695 = vunpack.c.l.b16 %v440
        %v696 = vunpack.c.h.b16 %v440
        %v697 = vunpack.c.l.b16 %v441
        %v698 = vunpack.c.h.b16 %v441
        %v699 = vunpack.c.l.b16 %v442
        %v700 = vunpack.c.h.b16 %v442
        %v701 = vunpack.c.l.b16 %v443
        %v702 = vunpack.c.h.b16 %v443
        %v703 = vunpack.c.l.b16 %v444
        %v704 = vunpack.c.h.b16 %v444
        %v705 = vunpack.c.l.b16 %v445
        %v706 = vunpack.c.h.b16 %v445
        %v707 = vunpack.c.l.b16 %v446
        %v708 = vunpack.c.h.b16 %v446
        %v709 = vunpack.c.l.b16 %v447
        %v710 = vunpack.c.h.b16 %v447
        %v711 = vunpack.c.l.b16 %v448
        %v712 = vunpack.c.h.b16 %v448
        %v713 = vunpack.c.l.b16 %v449
        %v714 = vunpack.c.h.b16 %v449
        %v715 = vunpack.c.l.b16 %v450
        %v716 = vunpack.c.h.b16 %v450
        %v717 = vunpack.c.l.b16 %v451
        %v718 = vunpack.c.h.b16 %v451
        %v719 = vunpack.c.l.b16 %v452
        %v720 = vunpack.c.h.b16 %v452
        %v721 = vunpack.c.l.b16 %v453
        %v722 = vunpack.c.h.b16 %v453
        %v723 = vunpack.c.l.b16 %v454
        %v724 = vunpack.c.h.b16 %v454
        %v725 = vunpack.c.l.b16 %v455
        %v726 = vunpack.c.h.b16 %v455
        %v727 = vunpack.c.l.b16 %v456
        %v728 = vunpack.c.h.b16 %v456
        %v729 = vunpack.c.l.b16 %v457
        %v730 = vunpack.c.h.b16 %v457
        %v731 = vunpack.c.l.b16 %v458
        %v732 = vunpack.c.h.b16 %v458
        %v733 = vunpack.c.l.b16 %v459
        %v734 = vunpack.c.h.b16 %v459
        %v735 = vunpack.c.l.b16 %v460
        %v736 = vunpack.c.h.b16 %v460
        %v737 = vunpack.c.l.b16 %v461
        %v738 = vunpack.c.h.b16 %v461
        %v739 = vunpack.c.l.b16 %v462
        %v740 = vunpack.c.h.b16 %v462
        %v741 = vunpack.c.l.b16 %v463
        %v742 = vunpack.c.h.b16 %v463
        %v743 = vunpack.c.l.b16 %v464
        %v744 = vunpack.c.h.b16 %v464
        %v745 = vunpack.c.l.b16 %v465
        %v746 = vunpack.c.h.b16 %v465
        %v747 = vunpack.c.l.b16 %v466
        %v748 = vunpack.c.h.b16 %v466
        %v749 = vunpack.c.l.b16 %v467
        %v750 = vunpack.c.h.b16 %v467
        %v751 = vunpack.c.l.b16 %v468
        %v752 = vunpack.c.h.b16 %v468
        %v753 = vunpack.c.l.b16 %v469
        %v754 = vunpack.c.h.b16 %v469
        %v755 = vunpack.c.l.b16 %v470
        %v756 = vunpack.c.h.b16 %v470
        %v757 = vunpack.c.l.b16 %v471
        %v758 = vunpack.c.h.b16 %v471
        %v759 = vunpack.c.l.b16 %v472
        %v760 = vunpack.c.h.b16 %v472
        %v761 = vunpack.c.l.b16 %v473
        %v762 = vunpack.c.h.b16 %v473
        %v763 = vunpack.c.l.b16 %v474
        %v764 = vunpack.c.h.b16 %v474
        %v765 = vunpack.c.l.b16 %v475
        %v766 = vunpack.c.h.b16 %v475
        %v767 = vunpack.c.l.b16 %v476
        %v768 = vunpack.c.h.b16 %v476
        %v769 = vunpack.c.l.b16 %v477
        %v770 = vunpack.c.h.b16 %v477
        %v771 = vunpack.c.l.b16 %v478
        %v772 = vunpack.c.h.b16 %v478
        %v773 = vunpack.c.l.b16 %v479
        %v774 = vunpack.c.h.b16 %v479
        %v775 = vunpack.c.l.b16 %v480
        %v776 = vunpack.c.h.b16 %v480
        %v777 = vunpack.c.l.b16 %v481
        %v778 = vunpack.c.h.b16 %v481
        %v779 = vunpack.c.l.b16 %v482
        %v780 = vunpack.c.h.b16 %v482
        %v781 = vunpack.c.l.b16 %v483
        %v782 = vunpack.c.h.b16 %v483
        %v783 = vunpack.c.l.b16 %v484
        %v784 = vunpack.c.h.b16 %v484
        %v785 = vunpack.c.l.b16 %v485
        %v786 = vunpack.c.h.b16 %v485
        %v787 = vunpack.c.l.b16 %v486
        %v788 = vunpack.c.h.b16 %v486
        %v789 = vunpack.c.l.b16 %v487
        %v790 = vunpack.c.h.b16 %v487
        %v791 = vunpack.c.l.b16 %v488
        %v792 = vunpack.c.h.b16 %v488
        %v793 = vunpack.c.l.b16 %v489
        %v794 = vunpack.c.h.b16 %v489
        %v795 = vunpack.c.l.b16 %v490
        %v796 = vunpack.c.h.b16 %v490
        %v797 = vpack.c.b16 %v603, %v601
        %v798 = vpack.c.b16 %v604, %v602
        %v799 = vpack.c.b16 %v607, %v605
        %v800 = vpack.c.b16 %v608, %v606
        %v801 = vpack.c.b16 %v611, %v609
        %v802 = vpack.c.b16 %v612, %v610
        %v803 = vpack.c.b16 %v615, %v613
        %v804 = vpack.c.b16 %v616, %v614
        %v805 = vpack.c.b16 %v619, %v617
        %v806 = vpack.c.b16 %v620, %v618
        %v807 = vpack.c.b16 %v623, %v621
        %v808 = vpack.c.b16 %v624, %v622
        %v809 = vpack.c.b16 %v627, %v625
        %v810 = vpack.c.b16 %v628, %v626
        %v811 = vpack.c.b16 %v631, %v629
        %v812 = vpack.c.b16 %v632, %v630
        %v813 = vpack.c.b16 %v635, %v633
        %v814 = vpack.c.b16 %v636, %v634
        %v815 = vpack.c.b16 %v639, %v637
        %v816 = vpack.c.b16 %v640, %v638
        %v817 = vpack.c.b16 %v643, %v641
        %v818 = vpack.c.b16 %v644, %v642
        %v819 = vpack.c.b16 %v647, %v645
        %v820 = vpack.c.b16 %v648, %v646
        %v821 = vpack.c.b16 %v651, %v649
        %v822 = vpack.c.b16 %v652, %v650
        %v823 = vpack.c.b16 %v655, %v653
        %v824 = vpack.c.b16 %v656, %v654
        %v825 = vpack.c.b16 %v659, %v657
        %v826 = vpack.c.b16 %v660, %v658
        %v827 = vpack.c.b16 %v663, %v661
        %v828 = vpack.c.b16 %v664, %v662
        %v829 = vpack.c.b16 %v667, %v665
        %v830 = vpack.c.b16 %v668, %v666
        %v831 = vpack.c.b16 %v671, %v669
        %v832 = vpack.c.b16 %v672, %v670
        %v833 = vpack.c.b16 %v675, %v673
        %v834 = vpack.c.b16 %v676, %v674
        %v835 = vpack.c.b16 %v679, %v677
        %v836 = vpack.c.b16 %v680, %v678
        %v837 = vpack.c.b16 %v683, %v681
        %v838 = vpack.c.b16 %v684, %v682
        %v839 = vpack.c.b16 %v687, %v685
        %v840 = vpack.c.b16 %v688, %v686
        %v841 = vpack.c.b16 %v691, %v689
        %v842 = vpack.c.b16 %v692, %v690
        %v843 = vpack.c.b16 %v695, %v693
        %v844 = vpack.c.b16 %v696, %v694
        %v845 = vpack.c.b16 %v699, %v697
        %v846 = vpack.c.b16 %v700, %v698
        %v847 = vpack.c.b16 %v703, %v701
        %v848 = vpack.c.b16 %v704, %v702
        %v849 = vpack.c.b16 %v707, %v705
        %v850 = vpack.c.b16 %v708, %v706
        %v851 = vpack.c.b16 %v711, %v709
        %v852 = vpack.c.b16 %v712, %v710
        %v853 = vpack.c.b16 %v715, %v713
        %v854 = vpack.c.b16 %v716, %v714
        %v855 = vpack.c.b16 %v719, %v717
        %v856 = vpack.c.b16 %v720, %v718
        %v857 = vpack.c.b16 %v723, %v721
        %v858 = vpack.c.b16 %v724, %v722
        %v859 = vpack.c.b16 %v727, %v725
        %v860 = vpack.c.b16 %v728, %v726
        %v861 = vpack.c.b16 %v731, %v729
        %v862 = vpack.c.b16 %v732, %v730
        %v863 = vpack.c.b16 %v735, %v733
        %v864 = vpack.c.b16 %v736, %v734
        %v865 = vpack.c.b16 %v739, %v737
        %v866 = vpack.c.b16 %v740, %v738
        %v867 = vpack.c.b16 %v743, %v741
        %v868 = vpack.c.b16 %v744, %v742
        %v869 = vpack.c.b16 %v747, %v745
        %v870 = vpack.c.b16 %v748, %v746
        %v871 = vpack.c.b16 %v751, %v749
        %v872 = vpack.c.b16 %v752, %v750
        %v873 = vpack.c.b16 %v755, %v753
        %v874 = vpack.c.b16 %v756, %v754
        %v875 = vpack.c.b16 %v759, %v757
        %v876 = vpack.c.b16 %v760, %v758
        %v877 = vpack.c.b16 %v763, %v761
        %v878 = vpack.c.b16 %v764, %v762
        %v879 = vpack.c.b16 %v767, %v765
        %v880 = vpack.c.b16 %v768, %v766
        %v881 = vpack.c.b16 %v771, %v769
        %v882 = vpack.c.b16 %v772, %v770
        %v883 = vpack.c.b16 %v775, %v773
        %v884 = vpack.c.b16 %v776, %v774
        %v885 = vpack.c.b16 %v779, %v777
        %v886 = vpack.c.b16 %v780, %v778
        %v887 = vpack.c.b16 %v783, %v781
        %v888 = vpack.c.b16 %v784, %v782
        %v889 = vpack.c.b16 %v787, %v785
        %v890 = vpack.c.b16 %v788, %v786
        %v891 = vpack.c.b16 %v791, %v789
        %v892 = vpack.c.b16 %v792, %v790
        %v893 = vpack.c.b16 %v795, %v793
        %v894 = vpack.c.b16 %v796, %v794
        %vm993 = vcmask 130048
        %v995 = vsel %vm993, %v392, 0
        %997 = vmatprep.subr.bf16.mxu0 %v798
        %998 = vmatpush1.bf16.msra.mxu0 %v797
        %999 = vmatprep.subr.bf16.mxu0 %v800
        %1000 = vmatpush1.bf16.msra.mxu0 %v799
        %1001 = vmatprep.subr.bf16.mxu0 %v802
        %1002 = vmatpush1.bf16.msra.mxu0 %v801
        %1003 = vmatprep.subr.bf16.mxu0 %v804
        %1004 = vmatpush1.bf16.msra.mxu0 %v803
        %1005 = vmatprep.subr.bf16.mxu0 %v806
        %1006 = vmatpush1.bf16.msra.mxu0 %v805
        %1007 = vmatprep.subr.bf16.mxu0 %v808
        %1008 = vmatpush1.bf16.msra.mxu0 %v807
        %1009 = vmatprep.subr.bf16.mxu0 %v810
        %1010 = vmatpush1.bf16.msra.mxu0 %v809
        %1011 = vmatprep.subr.bf16.mxu0 %v812
        %1012 = vmatpush1.bf16.msra.mxu0 %v811
        %1013 = vmatprep.subr.bf16.mxu0 %v814
        %1014 = vmatpush1.bf16.msra.mxu0 %v813
        %1015 = vmatprep.subr.bf16.mxu0 %v816
        %1016 = vmatpush1.bf16.msra.mxu0 %v815
        %1017 = vmatprep.subr.bf16.mxu0 %v818
        %1018 = vmatpush1.bf16.msra.mxu0 %v817
        %1019 = vmatprep.subr.bf16.mxu0 %v820
        %1020 = vmatpush1.bf16.msra.mxu0 %v819
        %1021 = vmatprep.subr.bf16.mxu0 %v822
        %1022 = vmatpush1.bf16.msra.mxu0 %v821
        %1023 = vmatprep.subr.bf16.mxu0 %v824
        %1024 = vmatpush1.bf16.msra.mxu0 %v823
        %1025 = vmatprep.subr.bf16.mxu0 %v826
        %1026 = vmatpush1.bf16.msra.mxu0 %v825
        %1027 = vmatprep.subr.bf16.mxu0 %v828
        %1028 = vmatpush1.bf16.msra.mxu0 %v827
        %1029 = vmatprep.mubr.bf16.mxu0 %v387
        %1030 = vmatmul.mubr.bf16.gmra.mrb[0].mxu0 %v386
        %v1031 = vpop.f32.mrb[0].mxu0
        %v1032 = vadd.f32 %v496, %v1031
        %v1033 = vpop.f32.mrb[0].mxu0
        %v1034 = vadd.f32 %v500, %v1033
        %v1035 = vpop.f32.mrb[0].mxu0
        %v1036 = vadd.f32 %v496, %v1035
        %v1037 = vpop.f32.mrb[0].mxu0
        %v1038 = vadd.f32 %v500, %v1037
        %1039 = vdwg.mxu0
        %1040 = vmatprep.subr.bf16.mxu0 %v830
        %1041 = vmatpush1.bf16.msra.mxu0 %v829
        %1042 = vmatprep.subr.bf16.mxu0 %v832
        %1043 = vmatpush1.bf16.msra.mxu0 %v831
        %1044 = vmatprep.subr.bf16.mxu0 %v834
        %1045 = vmatpush1.bf16.msra.mxu0 %v833
        %1046 = vmatprep.subr.bf16.mxu0 %v836
        %1047 = vmatpush1.bf16.msra.mxu0 %v835
        %1048 = vmatprep.subr.bf16.mxu0 %v838
        %1049 = vmatpush1.bf16.msra.mxu0 %v837
        %1050 = vmatprep.subr.bf16.mxu0 %v840
        %1051 = vmatpush1.bf16.msra.mxu0 %v839
        %1052 = vmatprep.subr.bf16.mxu0 %v842
        %1053 = vmatpush1.bf16.msra.mxu0 %v841
        %1054 = vmatprep.subr.bf16.mxu0 %v844
        %1055 = vmatpush1.bf16.msra.mxu0 %v843
        %1056 = vmatprep.subr.bf16.mxu0 %v846
        %1057 = vmatpush1.bf16.msra.mxu0 %v845
        %1058 = vmatprep.subr.bf16.mxu0 %v848
        %1059 = vmatpush1.bf16.msra.mxu0 %v847
        %1060 = vmatprep.subr.bf16.mxu0 %v850
        %1061 = vmatpush1.bf16.msra.mxu0 %v849
        %1062 = vmatprep.subr.bf16.mxu0 %v852
        %1063 = vmatpush1.bf16.msra.mxu0 %v851
        %1064 = vmatprep.subr.bf16.mxu0 %v854
        %1065 = vmatpush1.bf16.msra.mxu0 %v853
        %1066 = vmatprep.subr.bf16.mxu0 %v856
        %1067 = vmatpush1.bf16.msra.mxu0 %v855
        %1068 = vmatprep.subr.bf16.mxu0 %v858
        %1069 = vmatpush1.bf16.msra.mxu0 %v857
        %1070 = vmatprep.subr.bf16.mxu0 %v860
        %1071 = vmatpush1.bf16.msra.mxu0 %v859
        %1072 = vmatprep.mubr.bf16.mxu0 %v389
        %1073 = vmatmul.mubr.bf16.gmra.mrb[0].mxu0 %v388
        %v1074 = vpop.f32.mrb[0].mxu0
        %v1075 = vadd.f32 %v1032, %v1074
        %v1076 = vpop.f32.mrb[0].mxu0
        %v1077 = vadd.f32 %v1034, %v1076
        %v1078 = vpop.f32.mrb[0].mxu0
        %v1079 = vadd.f32 %v1036, %v1078
        %v1080 = vpop.f32.mrb[0].mxu0
        %v1081 = vadd.f32 %v1038, %v1080
        %1082 = vdwg.mxu0
        %1083 = vmatprep.subr.bf16.mxu0 %v862
        %1084 = vmatpush1.bf16.msra.mxu0 %v861
        %1085 = vmatprep.subr.bf16.mxu0 %v864
        %1086 = vmatpush1.bf16.msra.mxu0 %v863
        %1087 = vmatprep.subr.bf16.mxu0 %v866
        %1088 = vmatpush1.bf16.msra.mxu0 %v865
        %1089 = vmatprep.subr.bf16.mxu0 %v868
        %1090 = vmatpush1.bf16.msra.mxu0 %v867
        %1091 = vmatprep.subr.bf16.mxu0 %v870
        %1092 = vmatpush1.bf16.msra.mxu0 %v869
        %1093 = vmatprep.subr.bf16.mxu0 %v872
        %1094 = vmatpush1.bf16.msra.mxu0 %v871
        %1095 = vmatprep.subr.bf16.mxu0 %v874
        %1096 = vmatpush1.bf16.msra.mxu0 %v873
        %1097 = vmatprep.subr.bf16.mxu0 %v876
        %1098 = vmatpush1.bf16.msra.mxu0 %v875
        %1099 = vmatprep.subr.bf16.mxu0 %v878
        %1100 = vmatpush1.bf16.msra.mxu0 %v877
        %1101 = vmatprep.subr.bf16.mxu0 %v880
        %1102 = vmatpush1.bf16.msra.mxu0 %v879
        %1103 = vmatprep.subr.bf16.mxu0 %v882
        %1104 = vmatpush1.bf16.msra.mxu0 %v881
        %1105 = vmatprep.subr.bf16.mxu0 %v884
        %1106 = vmatpush1.bf16.msra.mxu0 %v883
        %1107 = vmatprep.subr.bf16.mxu0 %v886
        %1108 = vmatpush1.bf16.msra.mxu0 %v885
        %1109 = vmatprep.subr.bf16.mxu0 %v888
        %1110 = vmatpush1.bf16.msra.mxu0 %v887
        %1111 = vmatprep.subr.bf16.mxu0 %v890
        %1112 = vmatpush1.bf16.msra.mxu0 %v889
        %1113 = vmatprep.subr.bf16.mxu0 %v892
        %1114 = vmatpush1.bf16.msra.mxu0 %v891
        %1115 = vmatprep.mubr.bf16.mxu0 %v391
        %1116 = vmatmul.mubr.bf16.gmra.mrb[0].mxu0 %v390
        %v1117 = vpop.f32.mrb[0].mxu0
        %v1118 = vadd.f32 %v1075, %v1117
        %v1119 = vpop.f32.mrb[0].mxu0
        %v1120 = vadd.f32 %v1077, %v1119
        %v1121 = vpop.f32.mrb[0].mxu0
        %v1122 = vadd.f32 %v1079, %v1121
        %v1123 = vpop.f32.mrb[0].mxu0
        %v1124 = vadd.f32 %v1081, %v1123
        %1125 = vdwg.mxu0
        %1126 = vmatprep.subr.bf16.mxu0 %v894
        %1127 = vmatpush1.bf16.msra.mxu0 %v893
        %1128 = vmatprep.subr.bf16.mxu0 0
        %1129 = vmatpush1.bf16.msra.mxu0 0
        %1130 = vmatprep.subr.bf16.mxu0 0
        %1131 = vmatpush1.bf16.msra.mxu0 0
        %1132 = vmatprep.subr.bf16.mxu0 0
        %1133 = vmatpush1.bf16.msra.mxu0 0
        %1134 = vmatprep.subr.bf16.mxu0 0
        %1135 = vmatpush1.bf16.msra.mxu0 0
        %1136 = vmatprep.subr.bf16.mxu0 0
        %1137 = vmatpush1.bf16.msra.mxu0 0
        %1138 = vmatprep.subr.bf16.mxu0 0
        %1139 = vmatpush1.bf16.msra.mxu0 0
        %1140 = vmatprep.subr.bf16.mxu0 0
        %1141 = vmatpush1.bf16.msra.mxu0 0
        %1142 = vmatprep.subr.bf16.mxu0 0
        %1143 = vmatpush1.bf16.msra.mxu0 0
        %1144 = vmatprep.subr.bf16.mxu0 0
        %1145 = vmatpush1.bf16.msra.mxu0 0
        %1146 = vmatprep.subr.bf16.mxu0 0
        %1147 = vmatpush1.bf16.msra.mxu0 0
        %1148 = vmatprep.subr.bf16.mxu0 0
        %1149 = vmatpush1.bf16.msra.mxu0 0
        %1150 = vmatprep.subr.bf16.mxu0 0
        %1151 = vmatpush1.bf16.msra.mxu0 0
        %1152 = vmatprep.subr.bf16.mxu0 0
        %1153 = vmatpush1.bf16.msra.mxu0 0
        %1154 = vmatprep.subr.bf16.mxu0 0
        %1155 = vmatpush1.bf16.msra.mxu0 0
        %1156 = vmatprep.subr.bf16.mxu0 0
        %1157 = vmatpush1.bf16.msra.mxu0 0
        %1158 = vmatprep.mubr.bf16.mxu0 0
        %1159 = vmatmul.mubr.bf16.gmra.mrb[0].mxu0 %v995
        %v1160 = vpop.f32.mrb[0].mxu0
        %v1161 = vadd.f32 %v1118, %v1160
        %v1162 = vpop.f32.mrb[0].mxu0
        %v1163 = vadd.f32 %v1120, %v1162
        %v1164 = vpop.f32.mrb[0].mxu0
        %v1165 = vadd.f32 %v1122, %v1164
        %v1166 = vpop.f32.mrb[0].mxu0
        %v1167 = vadd.f32 %v1124, %v1166
        %1168 = vdwg.mxu0
        %v1169 = vmax.f32 %v1161, 0.0
        %v1170 = vmax.f32 %v1163, 0.0
        %v1171 = vmax.f32 %v1165, 0.0
        %v1172 = vmax.f32 %v1167, 0.0
        %v1173 = vpack.c.bf16 %v1171, %v1169
        %v1174 = vpack.c.bf16 %v1172, %v1170
        %v1175 = vld [vmem:[%s3] sm:$0xf]
        %v1176 = vld [vmem:[%s3 + $0x4] sm:$0xf]
        %v1177 = vld [vmem:[%s3 + $0x8] sm:$0xf]
        %v1178 = vld [vmem:[%s3 + $0xc] sm:$0xf]
        %v1179 = vld [vmem:[%s3 + $0x10] sm:$0xf]
        %v1180 = vld [vmem:[%s3 + $0x14] sm:$0xf]
        %v1181 = vld [vmem:[%s3 + $0x18] sm:$0xf]
        %v1182 = vld [vmem:[%s3 + $0x1c] sm:$0xf]
        %v1183 = vld [vmem:[%s3 + $0x20] sm:$0xf]
        %v1184 = vld [vmem:[%s3 + $0x24] sm:$0xf]
        %v1185 = vld [vmem:[%s3 + $0x28] sm:$0xf]
        %v1186 = vld [vmem:[%s3 + $0x2c] sm:$0xf]
        %v1187 = vld [vmem:[%s3 + $0x30] sm:$0xf]
        %v1188 = vld [vmem:[%s3 + $0x34] sm:$0xf]
        %v1189 = vld [vmem:[%s3 + $0x38] sm:$0xf]
        %v1190 = vld [vmem:[%s3 + $0x3c] sm:$0xf]
        %v1191 = vld [vmem:[%s3 + $0x40] sm:$0xf]
        %v1192 = vld [vmem:[%s3 + $0x44] sm:$0xf]
        %v1193 = vld [vmem:[%s3 + $0x48] sm:$0xf]
        %v1194 = vld [vmem:[%s3 + $0x4c] sm:$0xf]
        %v1195 = vld [vmem:[%s3 + $0x50] sm:$0xf]
        %v1196 = vld [vmem:[%s3 + $0x54] sm:$0xf]
        %v1197 = vld [vmem:[%s3 + $0x58] sm:$0xf]
        %v1198 = vld [vmem:[%s3 + $0x5c] sm:$0xf]
        %v1199 = vld [vmem:[%s3 + $0x60] sm:$0xf]
        %v1200 = vld [vmem:[%s3 + $0x64] sm:$0xf]
        %v1201 = vld [vmem:[%s3 + $0x68] sm:$0xf]
        %v1202 = vld [vmem:[%s3 + $0x6c] sm:$0xf]
        %v1203 = vld [vmem:[%s3 + $0x70] sm:$0xf]
        %v1204 = vld [vmem:[%s3 + $0x74] sm:$0xf]
        %v1205 = vld [vmem:[%s3 + $0x78] sm:$0xf]
        %v1206 = vld [vmem:[%s3 + $0x7c] sm:$0xf]
        %v1207 = vld [vmem:[%s4] sm:$0x1]
        %v1209 = vlaneseq
        %v1210 = vshrl.u32 %v1209, 7
        %v1211 = vsub.s32 0, %v1210
        %v1212 = vrot.slane %v1207, %v1211
        %v1246 = vunpack.c.l.b16 %v1175
        %v1247 = vunpack.c.l.b16 %v1176
        %v1248 = vunpack.c.l.b16 %v1177
        %v1249 = vunpack.c.l.b16 %v1178
        %v1250 = vunpack.c.l.b16 %v1179
        %v1251 = vunpack.c.l.b16 %v1180
        %v1252 = vunpack.c.l.b16 %v1181
        %v1253 = vunpack.c.l.b16 %v1182
        %v1254 = vunpack.c.l.b16 %v1183
        %v1255 = vunpack.c.l.b16 %v1184
        %v1256 = vunpack.c.l.b16 %v1185
        %v1257 = vunpack.c.l.b16 %v1186
        %v1258 = vunpack.c.l.b16 %v1187
        %v1259 = vunpack.c.l.b16 %v1188
        %v1260 = vunpack.c.l.b16 %v1189
        %v1261 = vunpack.c.l.b16 %v1190
        %v1262 = vunpack.c.l.b16 %v1191
        %v1263 = vunpack.c.l.b16 %v1192
        %v1264 = vunpack.c.l.b16 %v1193
        %v1265 = vunpack.c.l.b16 %v1194
        %v1266 = vunpack.c.l.b16 %v1195
        %v1267 = vunpack.c.l.b16 %v1196
        %v1268 = vunpack.c.l.b16 %v1197
        %v1269 = vunpack.c.l.b16 %v1198
        %v1270 = vunpack.c.l.b16 %v1199
        %v1271 = vunpack.c.l.b16 %v1200
        %v1272 = vunpack.c.l.b16 %v1201
        %v1273 = vunpack.c.l.b16 %v1202
        %v1274 = vunpack.c.l.b16 %v1203
        %v1275 = vunpack.c.l.b16 %v1204
        %v1276 = vunpack.c.l.b16 %v1205
        %v1277 = vunpack.c.l.b16 %v1206
        %v1278 = vpack.c.b16 %v1247, %v1246
        %v1279 = vpack.c.b16 %v1249, %v1248
        %v1280 = vpack.c.b16 %v1251, %v1250
        %v1281 = vpack.c.b16 %v1253, %v1252
        %v1282 = vpack.c.b16 %v1255, %v1254
        %v1283 = vpack.c.b16 %v1257, %v1256
        %v1284 = vpack.c.b16 %v1259, %v1258
        %v1285 = vpack.c.b16 %v1261, %v1260
        %v1286 = vpack.c.b16 %v1263, %v1262
        %v1287 = vpack.c.b16 %v1265, %v1264
        %v1288 = vpack.c.b16 %v1267, %v1266
        %v1289 = vpack.c.b16 %v1269, %v1268
        %v1290 = vpack.c.b16 %v1271, %v1270
        %v1291 = vpack.c.b16 %v1273, %v1272
        %v1292 = vpack.c.b16 %v1275, %v1274
        %v1293 = vpack.c.b16 %v1277, %v1276
        %1310 = vmatprep.subr.bf16.mxu0 0
        %1311 = vmatpush1.bf16.msra.mxu0 %v1278
        %1312 = vmatprep.subr.bf16.mxu0 0
        %1313 = vmatpush1.bf16.msra.mxu0 %v1279
        %1314 = vmatprep.subr.bf16.mxu0 0
        %1315 = vmatpush1.bf16.msra.mxu0 %v1280
        %1316 = vmatprep.subr.bf16.mxu0 0
        %1317 = vmatpush1.bf16.msra.mxu0 %v1281
        %1318 = vmatprep.subr.bf16.mxu0 0
        %1319 = vmatpush1.bf16.msra.mxu0 %v1282
        %1320 = vmatprep.subr.bf16.mxu0 0
        %1321 = vmatpush1.bf16.msra.mxu0 %v1283
        %1322 = vmatprep.subr.bf16.mxu0 0
        %1323 = vmatpush1.bf16.msra.mxu0 %v1284
        %1324 = vmatprep.subr.bf16.mxu0 0
        %1325 = vmatpush1.bf16.msra.mxu0 %v1285
        %1326 = vmatprep.subr.bf16.mxu0 0
        %1327 = vmatpush1.bf16.msra.mxu0 %v1286
        %1328 = vmatprep.subr.bf16.mxu0 0
        %1329 = vmatpush1.bf16.msra.mxu0 %v1287
        %1330 = vmatprep.subr.bf16.mxu0 0
        %1331 = vmatpush1.bf16.msra.mxu0 %v1288
        %1332 = vmatprep.subr.bf16.mxu0 0
        %1333 = vmatpush1.bf16.msra.mxu0 %v1289
        %1334 = vmatprep.subr.bf16.mxu0 0
        %1335 = vmatpush1.bf16.msra.mxu0 %v1290
        %1336 = vmatprep.subr.bf16.mxu0 0
        %1337 = vmatpush1.bf16.msra.mxu0 %v1291
        %1338 = vmatprep.subr.bf16.mxu0 0
        %1339 = vmatpush1.bf16.msra.mxu0 %v1292
        %1340 = vmatprep.subr.bf16.mxu0 0
        %1341 = vmatpush1.bf16.msra.mxu0 %v1293
        %1342 = vmatprep.mubr.bf16.mxu0 %v1174
        %1343 = vmatmul.mubr.bf16.gmra.mrb[0].mxu0 %v1173
        %v1344 = vpop.f32.mrb[0].mxu0
        %v1345 = vadd.f32 %v1212, %v1344
        %v1346 = vpop.f32.mrb[0].mxu0
        %v1347 = vpop.f32.mrb[0].mxu0
        %v1348 = vadd.f32 %v1212, %v1347
        %v1349 = vpop.f32.mrb[0].mxu0
        %1350 = vdwg.mxu0
        %v1351 = vmax.f32 %v1345, 0.0
        %v1352 = vmax.f32 %v1348, 0.0
        %v1353 = vpack.c.bf16 %v1352, %v1351
        %v1354 = vld [vmem:[%s5] sm:$0xf]
        %v1355 = vld [vmem:[%s5 + $0x4] sm:$0xf]
        %v1356 = vld [vmem:[%s5 + $0x8] sm:$0xf]
        %v1357 = vld [vmem:[%s5 + $0xc] sm:$0xf]
        %v1358 = vld [vmem:[%s5 + $0x10] sm:$0xf]
        %v1359 = vld [vmem:[%s5 + $0x14] sm:$0xf]
        %v1360 = vld [vmem:[%s5 + $0x18] sm:$0xf]
        %v1361 = vld [vmem:[%s5 + $0x1c] sm:$0xf]
        %v1362 = vld [vmem:[%s5 + $0x20] sm:$0xf]
        %v1363 = vld [vmem:[%s5 + $0x24] sm:$0xf]
        %v1364 = vld [vmem:[%s5 + $0x28] sm:$0xf]
        %v1365 = vld [vmem:[%s5 + $0x2c] sm:$0xf]
        %v1366 = vld [vmem:[%s5 + $0x30] sm:$0xf]
        %v1367 = vld [vmem:[%s5 + $0x34] sm:$0xf]
        %v1368 = vld [vmem:[%s5 + $0x38] sm:$0xf]
        %v1369 = vld [vmem:[%s5 + $0x3c] sm:$0xf]
        %v1370 = vld [vmem:[%s6] sm:$0x1]
        %v1372 = vlaneseq
        %v1373 = vshrl.u32 %v1372, 7
        %v1374 = vsub.s32 0, %v1373
        %v1375 = vrot.slane %v1370, %v1374
        %v1393 = vunpack.c.l.b16 %v1354
        %v1394 = vunpack.c.l.b16 %v1355
        %v1395 = vunpack.c.l.b16 %v1356
        %v1396 = vunpack.c.l.b16 %v1357
        %v1397 = vunpack.c.l.b16 %v1358
        %v1398 = vunpack.c.l.b16 %v1359
        %v1399 = vunpack.c.l.b16 %v1360
        %v1400 = vunpack.c.l.b16 %v1361
        %v1401 = vunpack.c.l.b16 %v1362
        %v1402 = vunpack.c.l.b16 %v1363
        %v1403 = vunpack.c.l.b16 %v1364
        %v1404 = vunpack.c.l.b16 %v1365
        %v1405 = vunpack.c.l.b16 %v1366
        %v1406 = vunpack.c.l.b16 %v1367
        %v1407 = vunpack.c.l.b16 %v1368
        %v1408 = vunpack.c.l.b16 %v1369
        %v1409 = vpack.c.b16 %v1394, %v1393
        %v1410 = vpack.c.b16 %v1396, %v1395
        %v1411 = vpack.c.b16 %v1398, %v1397
        %v1412 = vpack.c.b16 %v1400, %v1399
        %v1413 = vpack.c.b16 %v1402, %v1401
        %v1414 = vpack.c.b16 %v1404, %v1403
        %v1415 = vpack.c.b16 %v1406, %v1405
        %v1416 = vpack.c.b16 %v1408, %v1407
        %1425 = vmatprep.subr.bf16.mxu0 0
        %1426 = vmatpush1.bf16.msra.mxu0 %v1409
        %1427 = vmatprep.subr.bf16.mxu0 0
        %1428 = vmatpush1.bf16.msra.mxu0 %v1410
        %1429 = vmatprep.subr.bf16.mxu0 0
        %1430 = vmatpush1.bf16.msra.mxu0 %v1411
        %1431 = vmatprep.subr.bf16.mxu0 0
        %1432 = vmatpush1.bf16.msra.mxu0 %v1412
        %1433 = vmatprep.subr.bf16.mxu0 0
        %1434 = vmatpush1.bf16.msra.mxu0 %v1413
        %1435 = vmatprep.subr.bf16.mxu0 0
        %1436 = vmatpush1.bf16.msra.mxu0 %v1414
        %1437 = vmatprep.subr.bf16.mxu0 0
        %1438 = vmatpush1.bf16.msra.mxu0 %v1415
        %1439 = vmatprep.subr.bf16.mxu0 0
        %1440 = vmatpush1.bf16.msra.mxu0 %v1416
        %1441 = vmatprep.subr.bf16.mxu0 0
        %1442 = vmatpush1.bf16.msra.mxu0 0
        %1443 = vmatprep.subr.bf16.mxu0 0
        %1444 = vmatpush1.bf16.msra.mxu0 0
        %1445 = vmatprep.subr.bf16.mxu0 0
        %1446 = vmatpush1.bf16.msra.mxu0 0
        %1447 = vmatprep.subr.bf16.mxu0 0
        %1448 = vmatpush1.bf16.msra.mxu0 0
        %1449 = vmatprep.subr.bf16.mxu0 0
        %1450 = vmatpush1.bf16.msra.mxu0 0
        %1451 = vmatprep.subr.bf16.mxu0 0
        %1452 = vmatpush1.bf16.msra.mxu0 0
        %1453 = vmatprep.subr.bf16.mxu0 0
        %1454 = vmatpush1.bf16.msra.mxu0 0
        %1455 = vmatprep.subr.bf16.mxu0 0
        %1456 = vmatpush1.bf16.msra.mxu0 0
        %1457 = vmatprep.mubr.bf16.mxu0 0
        %1458 = vmatmul.mubr.bf16.gmra.mrb[0].mxu0 %v1353
        %v1459 = vpop.f32.mrb[0].mxu0
        %v1460 = vadd.f32 %v1375, %v1459
        %v1461 = vpop.f32.mrb[0].mxu0
        %v1462 = vpop.f32.mrb[0].mxu0
        %v1463 = vadd.f32 %v1375, %v1462
        %v1464 = vpop.f32.mrb[0].mxu0
        %1465 = vdwg.mxu0
        %v1466 = vmax.f32 %v1460, 0.0
        %v1467 = vmax.f32 %v1463, 0.0
        %v1468 = vpack.c.bf16 %v1467, %v1466
        %v1469 = vld [vmem:[%s7] sm:$0xf]
        %v1470 = vld [vmem:[%s7 + $0x4] sm:$0xf]
        %v1471 = vld [vmem:[%s7 + $0x8] sm:$0xf]
        %v1472 = vld [vmem:[%s7 + $0xc] sm:$0xf]
        %v1473 = vld [vmem:[%s7 + $0x10] sm:$0xf]
        %v1474 = vld [vmem:[%s7 + $0x14] sm:$0xf]
        %v1475 = vld [vmem:[%s7 + $0x18] sm:$0xf]
        %v1476 = vld [vmem:[%s7 + $0x1c] sm:$0xf]
        %v1477 = vld [vmem:[%s8] sm:$0x1]
        %v1479 = vlaneseq
        %v1480 = vshrl.u32 %v1479, 7
        %v1481 = vsub.s32 0, %v1480
        %v1482 = vrot.slane %v1477, %v1481
        %v1492 = vunpack.c.l.b16 %v1469
        %v1493 = vunpack.c.l.b16 %v1470
        %v1494 = vunpack.c.l.b16 %v1471
        %v1495 = vunpack.c.l.b16 %v1472
        %v1496 = vunpack.c.l.b16 %v1473
        %v1497 = vunpack.c.l.b16 %v1474
        %v1498 = vunpack.c.l.b16 %v1475
        %v1499 = vunpack.c.l.b16 %v1476
        %v1500 = vpack.c.b16 %v1493, %v1492
        %v1501 = vpack.c.b16 %v1495, %v1494
        %v1502 = vpack.c.b16 %v1497, %v1496
        %v1503 = vpack.c.b16 %v1499, %v1498
        %vm1508 = vcmask 523264
        %v1510 = vsel %vm1508, %v1468, 0
        %1512 = vmatprep.subr.bf16.mxu0 0
        %1513 = vmatpush1.bf16.msra.mxu0 %v1500
        %1514 = vmatprep.subr.bf16.mxu0 0
        %1515 = vmatpush1.bf16.msra.mxu0 %v1501
        %1516 = vmatprep.subr.bf16.mxu0 0
        %1517 = vmatpush1.bf16.msra.mxu0 %v1502
        %1518 = vmatprep.subr.bf16.mxu0 0
        %1519 = vmatpush1.bf16.msra.mxu0 %v1503
        %1520 = vmatprep.subr.bf16.mxu0 0
        %1521 = vmatpush1.bf16.msra.mxu0 0
        %1522 = vmatprep.subr.bf16.mxu0 0
        %1523 = vmatpush1.bf16.msra.mxu0 0
        %1524 = vmatprep.subr.bf16.mxu0 0
        %1525 = vmatpush1.bf16.msra.mxu0 0
        %1526 = vmatprep.subr.bf16.mxu0 0
        %1527 = vmatpush1.bf16.msra.mxu0 0
        %1528 = vmatprep.subr.bf16.mxu0 0
        %1529 = vmatpush1.bf16.msra.mxu0 0
        %1530 = vmatprep.subr.bf16.mxu0 0
        %1531 = vmatpush1.bf16.msra.mxu0 0
        %1532 = vmatprep.subr.bf16.mxu0 0
        %1533 = vmatpush1.bf16.msra.mxu0 0
        %1534 = vmatprep.subr.bf16.mxu0 0
        %1535 = vmatpush1.bf16.msra.mxu0 0
        %1536 = vmatprep.subr.bf16.mxu0 0
        %1537 = vmatpush1.bf16.msra.mxu0 0
        %1538 = vmatprep.subr.bf16.mxu0 0
        %1539 = vmatpush1.bf16.msra.mxu0 0
        %1540 = vmatprep.subr.bf16.mxu0 0
        %1541 = vmatpush1.bf16.msra.mxu0 0
        %1542 = vmatprep.subr.bf16.mxu0 0
        %1543 = vmatpush1.bf16.msra.mxu0 0
        %1544 = vmatprep.mubr.bf16.mxu0 0
        %1545 = vmatmul.mubr.bf16.gmra.mrb[0].mxu0 %v1510
        %v1546 = vpop.f32.mrb[0].mxu0
        %v1547 = vadd.f32 %v1482, %v1546
        %v1548 = vpop.f32.mrb[0].mxu0
        %v1549 = vpop.f32.mrb[0].mxu0
        %v1550 = vadd.f32 %v1482, %v1549
        %v1551 = vpop.f32.mrb[0].mxu0
        %1552 = vdwg.mxu0
        %vm1553 = vcmask 80896
        %v1554 = vsel %vm1553, %v1547, -inf
        %1555 = vmax.xlane.f32.xlu0 %v1554
        %v1556 = vpop.xlane.xlu0 %1555
        %v1557 = vsel %vm1553, %v1550, -inf
        %1558 = vmax.xlane.f32.xlu0 %v1557
        %v1559 = vpop.xlane.xlu0 %1558
        %v1560 = vsub.f32 %v1547, %v1556
        %v1561 = vsub.f32 %v1550, %v1559
        %v1562 = vmul.f32 %v1560, 1.442695
        %v1563 = vpow.pop %v1562
        %v1564 = vmul.f32 %v1561, 1.442695
        %v1565 = vpow.pop %v1564
        %v1566 = vsel %vm1553, %v1563, 0.0
        %1567 = vadd.xlane.f32.xlu0 %v1566
        %v1568 = vpop.xlane.xlu0 %1567
        %v1569 = vsel %vm1553, %v1565, 0.0
        %1570 = vadd.xlane.f32.xlu0 %v1569
        %v1571 = vpop.xlane.xlu0 %1570
        %v1572 = vlog2.pop %v1568
        %v1573 = vmul.f32 %v1572, 0.6931472
        %v1574 = vlog2.pop %v1571
        %v1575 = vmul.f32 %v1574, 0.6931472
        %v1576 = vsub.f32 %v1560, %v1573
        %v1577 = vsub.f32 %v1561, %v1575
        %1578 = vst.msk [vmem:[%s369] sm:$0xff] %vm1553, %v1576
        %1579 = vst.msk [vmem:[%s369 + $0x8] sm:$0xff] %vm1553, %v1577
        %s1580 = smul.u32 2, %s24
        %p1581 = scmp.lt.s32.totalorder %s1580, 3
        %s1582 = scalar_select %p1581, %s1580, 3
        %s1583 = smul.addr %s1582, 8
        %s1584 = scalar_lea.vmem %s9, %s1583
        // Predicated region
        $region65: #{tpu_custom_call.1} parent=55 // pred_check
          %p1585 = pneg %p236
        $region66: #{tpu_custom_call.1} parent=55 // pred_check_branch
          %1587 = sbr.rel (%p1585) target = $region68
        $region67: #{tpu_custom_call.1} parent=55 // pred_region
          %s1588 = smul.u32 2, %s24
        $region68: #{tpu_custom_call.1} parent=55 // pred_fallthru
          _
      $region56: #{tpu_custom_call.1} parent=5 // pred_fallthru
        _
      %p1589 = scmp.le.s32.totalorder 2, %s19
      // Predicated region
      $region69: #{tpu_custom_call.1} parent=5 // pred_check
        %p1590 = pneg %p1589
      $region70: #{tpu_custom_call.1} parent=5 // pred_check_branch
        %1592 = sbr.rel (%p1590) target = $region72
      $region71: #{tpu_custom_call.1} parent=5 // pred_region
        %s1593 = ssub.s32 %s19, 2
        // Predicated region
        $region73: #{tpu_custom_call.1} parent=71 // pred_check
          %p1594 = pneg %p242
        $region74: #{tpu_custom_call.1} parent=71 // pred_check_branch
          %1596 = sbr.rel (%p1594) target = $region76
        $region75: #{tpu_custom_call.1} parent=71 // pred_region
          %s1597 = smul.u32 2, %s25
          %p1598 = scmp.lt.s32.totalorder %s1597, 3
          %s1599 = scalar_select %p1598, %s1597, 3
          %s1600 = smul.addr %s1599, 8
          %s1601 = scalar_lea.vmem %s9, %s1600
        $region76: #{tpu_custom_call.1} parent=71 // pred_fallthru
          _
      $region72: #{tpu_custom_call.1} parent=5 // pred_fallthru
        _
    $region6: #{tpu_custom_call.1} parent=1 // loop_footer
      %s23 = sadd.s32 1, %s19
    $region7: #{tpu_custom_call.1} parent=1 // loop_footer_branch
      %18 = sbr.rel target = $region3
    $region8: #{tpu_custom_call.1} parent=1 // loop_exit
      _
    %1602 = vsyncpa [#allocation3], 1
    %s1603 = scalar_lea.sflag [#allocation3], 1
    %1604 = vsyncpa %s1603, 1
    %1605 = vsyncpa [#allocation5], 1

// kernel: tpu_custom_call.1
$region0: #{tpu_custom_call.1}
  #allocation0 [shape = 'u32[]', space=smem, size = 0x4, offset = 0x4, fixed_abs, tag = 'smem constant byte address 0x4 - core index']
  #allocation1 [shape = 'u32[144,128]{1,0:T(1,128)}', space=vmem, size = 0x12000, scoped, tag = 'internal scratch']
  %s0 = inlined_call_operand.hbm [shape: f32[32,784], index: 0, kind: input, shape index: {}]
  %s1 = inlined_call_operand.hbm [shape: bf16[784,256], index: 1, kind: input, shape index: {}]
  %s2 = inlined_call_operand.vmem [shape: f32[1,256], index: 2, kind: input, shape index: {}]
  %s3 = inlined_call_operand.vmem [shape: bf16[256,128], index: 3, kind: input, shape index: {}]
  %s4 = inlined_call_operand.vmem [shape: f32[1,128], index: 4, kind: input, shape index: {}]
  %s5 = inlined_call_operand.vmem [shape: bf16[128,64], index: 5, kind: input, shape index: {}]
  %s6 = inlined_call_operand.vmem [shape: f32[1,64], index: 6, kind: input, shape index: {}]
  %s7 = inlined_call_operand.vmem [shape: bf16[64,10], index: 7, kind: input, shape index: {}]
  %s8 = inlined_call_operand.vmem [shape: f32[1,10], index: 8, kind: input, shape index: {}]
  %s9 = inlined_call_operand.vmem [shape: f32[32,10], index: 9, kind: output, shape index: {}]
  %s10 = sld [smem:[#allocation0]]
  $region77: #{tpu_custom_call.1} parent=0
    _
  %s12 = ssub.s32 1, %s10
  %s13 = scalar_select 0, %s12, %s10
  $region1: #{tpu_custom_call.1} parent=0
    #allocation2 [shape = 'u8[114688]{0}', space=vmem, size = 0x1c000, scoped, tag = 'input window, operand 0']
    #allocation3 [shape = 's32[2]{0}', space=sflag, size = 0x8, scoped, tag = 'scoped memory for tpu_custom_call.1']
    #allocation4 [shape = 'u8[401408]{0}', space=vmem, size = 0x62000, scoped, tag = 'input window, operand 1, single buffered']
    #allocation5 [shape = 's32[1]{0}', space=sflag, size = 0x4, scoped, tag = 'scoped memory for tpu_custom_call.1']
    %14 = vsyncpa [#allocation3], 0
    %s15 = scalar_lea.sflag [#allocation3], 1
    %16 = vsyncpa %s15, 0
    %17 = vsyncpa [#allocation5], 0
    loop: start=0, step=1, limit=4
    $region2: #{tpu_custom_call.1} parent=1 // loop_pre_header
      _
    $region3: #{tpu_custom_call.1} parent=1 // loop_header
      %s19 = sphi 0, %s23
      %p20 = scmp.ge.s32.totalorder %s19, 4
      %s29 = sphi 0, %s31
      %s32 = sphi 0, %s29
      %s33 = sphi 0, %s32
      %s49 = sphi 0, %s33
      %s53 = sphi 0, %s53
      %s55 = sphi 0, %s53
      %s56 = sphi 0, %s55
      %s70 = sphi 0, %s56
      %s74 = sphi 0, %s74
      %s76 = sphi 0, %s74
      %s77 = sphi 0, %s76
      %s91 = sphi 0, %s77
      %s95 = sphi 0, %s95
      %s97 = sphi 0, %s95
      %s98 = sphi 0, %s97
      %s112 = sphi 0, %s98
      %s116 = sphi 0, %s116
      %s118 = sphi 0, %s116
      %s119 = sphi 0, %s118
      %s133 = sphi 0, %s119
      %s137 = sphi 0, %s137
      %s139 = sphi 0, %s137
      %s140 = sphi 0, %s139
      %s154 = sphi 0, %s140
      %s158 = sphi 0, %s158
      %s160 = sphi 0, %s158
      %s161 = sphi 0, %s160
      %s175 = sphi 0, %s161
      %s179 = sphi 0, %s179
      %s181 = sphi 0, %s179
      %s182 = sphi 0, %s181
      %s196 = sphi 0, %s182
      %s200 = sphi 0, %s200
      %s202 = sphi 0, %s200
      %s203 = sphi 0, %s202
      %s217 = sphi 0, %s203
      %s223 = sphi 0, %s225
      %s226 = sphi 0, %s223
      %s227 = sphi 0, %s226
      %s243 = sphi 0, %s227
    $region4: #{tpu_custom_call.1} parent=1 // loop_header_branch
      %22 = sbr.rel (%p20) target = $region8
    $region5: #{tpu_custom_call.1} parent=1 // loop_body
      %s24 = ssub.s32 %s19, 1
      %s25 = ssub.s32 %s19, 2
      %s26 = sadd.s32 %s19, 1
      %s27 = ssub.s32 %s19, %s26
      %p28 = scmp.eq.s32.totalorder %s27, 0
      %s30 = sadd.s32 %s29, 1
      %s31 = scalar_select %p28, %s29, %s30
      %p34 = pneg %p28
      %p35 = scmp.eq.s32.totalorder %s19, 1
      %p36 = por %p34, %p35
      %p37 = scmp.ne.s32.totalorder %s29, %s32
      %p38 = scmp.eq.s32.totalorder %s19, 0
      %p39 = por %p37, %p38
      %p40 = scmp.ne.s32.totalorder %s29, %s32
      %p41 = scmp.eq.s32.totalorder %s24, 1
      %p42 = por %p40, %p41
      %p43 = scmp.ne.s32.totalorder %s32, %s33
      %p44 = scmp.eq.s32.totalorder %s24, 0
      %p45 = por %p43, %p44
      %p46 = scmp.ne.s32.totalorder %s32, %s33
      %p47 = scmp.eq.s32.totalorder %s25, 1
      %p48 = por %p46, %p47
      %p50 = scmp.ne.s32.totalorder %s33, %s49
      %p51 = scmp.eq.s32.totalorder %s25, 0
      %p52 = por %p50, %p51
      %s54 = sadd.s32 %s53, 1
      %p57 = scmp.eq.s32.totalorder %s19, 1
      %p58 = scmp.ne.s32.totalorder %s53, %s55
      %p59 = scmp.eq.s32.totalorder %s19, 0
      %p60 = por %p58, %p59
      %p61 = scmp.ne.s32.totalorder %s53, %s55
      %p62 = scmp.eq.s32.totalorder %s24, 1
      %p63 = por %p61, %p62
      %p64 = scmp.ne.s32.totalorder %s55, %s56
      %p65 = scmp.eq.s32.totalorder %s24, 0
      %p66 = por %p64, %p65
      %p67 = scmp.ne.s32.totalorder %s55, %s56
      %p68 = scmp.eq.s32.totalorder %s25, 1
      %p69 = por %p67, %p68
      %p71 = scmp.ne.s32.totalorder %s56, %s70
      %p72 = scmp.eq.s32.totalorder %s25, 0
      %p73 = por %p71, %p72
      %s75 = sadd.s32 %s74, 1
      %p78 = scmp.eq.s32.totalorder %s19, 1
      %p79 = scmp.ne.s32.totalorder %s74, %s76
      %p80 = scmp.eq.s32.totalorder %s19, 0
      %p81 = por %p79, %p80
      %p82 = scmp.ne.s32.totalorder %s74, %s76
      %p83 = scmp.eq.s32.totalorder %s24, 1
      %p84 = por %p82, %p83
      %p85 = scmp.ne.s32.totalorder %s76, %s77
      %p86 = scmp.eq.s32.totalorder %s24, 0
      %p87 = por %p85, %p86
      %p88 = scmp.ne.s32.totalorder %s76, %s77
      %p89 = scmp.eq.s32.totalorder %s25, 1
      %p90 = por %p88, %p89
      %p92 = scmp.ne.s32.totalorder %s77, %s91
      %p93 = scmp.eq.s32.totalorder %s25, 0
      %p94 = por %p92, %p93
      %s96 = sadd.s32 %s95, 1
      %p99 = scmp.eq.s32.totalorder %s19, 1
      %p100 = scmp.ne.s32.totalorder %s95, %s97
      %p101 = scmp.eq.s32.totalorder %s19, 0
      %p102 = por %p100, %p101
      %p103 = scmp.ne.s32.totalorder %s95, %s97
      %p104 = scmp.eq.s32.totalorder %s24, 1
      %p105 = por %p103, %p104
      %p106 = scmp.ne.s32.totalorder %s97, %s98
      %p107 = scmp.eq.s32.totalorder %s24, 0
      %p108 = por %p106, %p107
      %p109 = scmp.ne.s32.totalorder %s97, %s98
      %p110 = scmp.eq.s32.totalorder %s25, 1
      %p111 = por %p109, %p110
      %p113 = scmp.ne.s32.totalorder %s98, %s112
      %p114 = scmp.eq.s32.totalorder %s25, 0
      %p115 = por %p113, %p114
      %s117 = sadd.s32 %s116, 1
      %p120 = scmp.eq.s32.totalorder %s19, 1
      %p121 = scmp.ne.s32.totalorder %s116, %s118
      %p122 = scmp.eq.s32.totalorder %s19, 0
      %p123 = por %p121, %p122
      %p124 = scmp.ne.s32.totalorder %s116, %s118
      %p125 = scmp.eq.s32.totalorder %s24, 1
      %p126 = por %p124, %p125
      %p127 = scmp.ne.s32.totalorder %s118, %s119
      %p128 = scmp.eq.s32.totalorder %s24, 0
      %p129 = por %p127, %p128
      %p130 = scmp.ne.s32.totalorder %s118, %s119
      %p131 = scmp.eq.s32.totalorder %s25, 1
      %p132 = por %p130, %p131
      %p134 = scmp.ne.s32.totalorder %s119, %s133
      %p135 = scmp.eq.s32.totalorder %s25, 0
      %p136 = por %p134, %p135
      %s138 = sadd.s32 %s137, 1
      %p141 = scmp.eq.s32.totalorder %s19, 1
      %p142 = scmp.ne.s32.totalorder %s137, %s139
      %p143 = scmp.eq.s32.totalorder %s19, 0
      %p144 = por %p142, %p143
      %p145 = scmp.ne.s32.totalorder %s137, %s139
      %p146 = scmp.eq.s32.totalorder %s24, 1
      %p147 = por %p145, %p146
      %p148 = scmp.ne.s32.totalorder %s139, %s140
      %p149 = scmp.eq.s32.totalorder %s24, 0
      %p150 = por %p148, %p149
      %p151 = scmp.ne.s32.totalorder %s139, %s140
      %p152 = scmp.eq.s32.totalorder %s25, 1
      %p153 = por %p151, %p152
      %p155 = scmp.ne.s32.totalorder %s140, %s154
      %p156 = scmp.eq.s32.totalorder %s25, 0
      %p157 = por %p155, %p156
      %s159 = sadd.s32 %s158, 1
      %p162 = scmp.eq.s32.totalorder %s19, 1
      %p163 = scmp.ne.s32.totalorder %s158, %s160
      %p164 = scmp.eq.s32.totalorder %s19, 0
      %p165 = por %p163, %p164
      %p166 = scmp.ne.s32.totalorder %s158, %s160
      %p167 = scmp.eq.s32.totalorder %s24, 1
      %p168 = por %p166, %p167
      %p169 = scmp.ne.s32.totalorder %s160, %s161
      %p170 = scmp.eq.s32.totalorder %s24, 0
      %p171 = por %p169, %p170
      %p172 = scmp.ne.s32.totalorder %s160, %s161
      %p173 = scmp.eq.s32.totalorder %s25, 1
      %p174 = por %p172, %p173
      %p176 = scmp.ne.s32.totalorder %s161, %s175
      %p177 = scmp.eq.s32.totalorder %s25, 0
      %p178 = por %p176, %p177
      %s180 = sadd.s32 %s179, 1
      %p183 = scmp.eq.s32.totalorder %s19, 1
      %p184 = scmp.ne.s32.totalorder %s179, %s181
      %p185 = scmp.eq.s32.totalorder %s19, 0
      %p186 = por %p184, %p185
      %p187 = scmp.ne.s32.totalorder %s179, %s181
      %p188 = scmp.eq.s32.totalorder %s24, 1
      %p189 = por %p187, %p188
      %p190 = scmp.ne.s32.totalorder %s181, %s182
      %p191 = scmp.eq.s32.totalorder %s24, 0
      %p192 = por %p190, %p191
      %p193 = scmp.ne.s32.totalorder %s181, %s182
      %p194 = scmp.eq.s32.totalorder %s25, 1
      %p195 = por %p193, %p194
      %p197 = scmp.ne.s32.totalorder %s182, %s196
      %p198 = scmp.eq.s32.totalorder %s25, 0
      %p199 = por %p197, %p198
      %s201 = sadd.s32 %s200, 1
      %p204 = scmp.eq.s32.totalorder %s19, 1
      %p205 = scmp.ne.s32.totalorder %s200, %s202
      %p206 = scmp.eq.s32.totalorder %s19, 0
      %p207 = por %p205, %p206
      %p208 = scmp.ne.s32.totalorder %s200, %s202
      %p209 = scmp.eq.s32.totalorder %s24, 1
      %p210 = por %p208, %p209
      %p211 = scmp.ne.s32.totalorder %s202, %s203
      %p212 = scmp.eq.s32.totalorder %s24, 0
      %p213 = por %p211, %p212
      %p214 = scmp.ne.s32.totalorder %s202, %s203
      %p215 = scmp.eq.s32.totalorder %s25, 1
      %p216 = por %p214, %p215
      %p218 = scmp.ne.s32.totalorder %s203, %s217
      %p219 = scmp.eq.s32.totalorder %s25, 0
      %p220 = por %p218, %p219
      %s221 = ssub.s32 %s19, %s26
      %p222 = scmp.eq.s32.totalorder %s221, 0
      %s224 = sadd.s32 %s223, 1
      %s225 = scalar_select %p222, %s223, %s224
      %p228 = pneg %p222
      %p229 = scmp.eq.s32.totalorder %s19, 1
      %p230 = por %p228, %p229
      %p231 = scmp.ne.s32.totalorder %s223, %s226
      %p232 = scmp.eq.s32.totalorder %s19, 0
      %p233 = por %p231, %p232
      %p234 = scmp.ne.s32.totalorder %s223, %s226
      %p235 = scmp.eq.s32.totalorder %s24, 1
      %p236 = por %p234, %p235
      %p237 = scmp.ne.s32.totalorder %s226, %s227
      %p238 = scmp.eq.s32.totalorder %s24, 0
      %p239 = por %p237, %p238
      %p240 = scmp.ne.s32.totalorder %s226, %s227
      %p241 = scmp.eq.s32.totalorder %s25, 1
      %p242 = por %p240, %p241
      %p244 = scmp.ne.s32.totalorder %s227, %s243
      %p245 = scmp.eq.s32.totalorder %s25, 0
      %p246 = por %p244, %p245
      %p247 = scmp.le.s32.totalorder 1, %s19
      %p248 = scmp.lt.s32.totalorder %s19, 3
      %p249 = pnand %p247, %p248
      %p250 = pneg %p249
      // Predicated region
      $region9: #{tpu_custom_call.1} parent=5 // pred_check
        _
      $region10: #{tpu_custom_call.1} parent=5 // pred_check_branch
        %252 = sbr.rel (%p249) target = $region12
      $region11: #{tpu_custom_call.1} parent=5 // pred_region
        %s253 = ssub.s32 %s19, 1
        // Predicated region
        $region13: #{tpu_custom_call.1} parent=11 // pred_check
          %p254 = pneg %p66
        $region14: #{tpu_custom_call.1} parent=11 // pred_check_branch
          %256 = sbr.rel (%p254) target = $region16
        $region15: #{tpu_custom_call.1} parent=11 // pred_region
          %s258 = ssub.s32 12544, 12544
          %259 = vsyncadd [#allocation5], %s258
          %s260 = sshll.u32 [#allocation4], 4
          %s261 = int_to_ptr.vmem [resolvable:$true] %s260
          %266 = dma.hbm_to_vmem [thread:$0]  %s1, 12544, %s261, [#allocation5], 128, 128, 8
        $region16: #{tpu_custom_call.1} parent=11 // pred_fallthru
          _
        // Predicated region
        $region17: #{tpu_custom_call.1} parent=11 // pred_check
          %p267 = pneg %p87
        $region18: #{tpu_custom_call.1} parent=11 // pred_check_branch
          %269 = sbr.rel (%p267) target = $region20
        $region19: #{tpu_custom_call.1} parent=11 // pred_region
          _
        $region20: #{tpu_custom_call.1} parent=11 // pred_fallthru
          _
        // Predicated region
        $region21: #{tpu_custom_call.1} parent=11 // pred_check
          %p270 = pneg %p108
        $region22: #{tpu_custom_call.1} parent=11 // pred_check_branch
          %272 = sbr.rel (%p270) target = $region24
        $region23: #{tpu_custom_call.1} parent=11 // pred_region
          _
        $region24: #{tpu_custom_call.1} parent=11 // pred_fallthru
          _
        // Predicated region
        $region25: #{tpu_custom_call.1} parent=11 // pred_check
          %p273 = pneg %p129
        $region26: #{tpu_custom_call.1} parent=11 // pred_check_branch
          %275 = sbr.rel (%p273) target = $region28
        $region27: #{tpu_custom_call.1} parent=11 // pred_region
          _
        $region28: #{tpu_custom_call.1} parent=11 // pred_fallthru
          _
        // Predicated region
        $region29: #{tpu_custom_call.1} parent=11 // pred_check
          %p276 = pneg %p150
        $region30: #{tpu_custom_call.1} parent=11 // pred_check_branch
          %278 = sbr.rel (%p276) target = $region32
        $region31: #{tpu_custom_call.1} parent=11 // pred_region
          _
        $region32: #{tpu_custom_call.1} parent=11 // pred_fallthru
          _
        // Predicated region
        $region33: #{tpu_custom_call.1} parent=11 // pred_check
          %p279 = pneg %p171
        $region34: #{tpu_custom_call.1} parent=11 // pred_check_branch
          %281 = sbr.rel (%p279) target = $region36
        $region35: #{tpu_custom_call.1} parent=11 // pred_region
          _
        $region36: #{tpu_custom_call.1} parent=11 // pred_fallthru
          _
        // Predicated region
        $region37: #{tpu_custom_call.1} parent=11 // pred_check
          %p282 = pneg %p192
        $region38: #{tpu_custom_call.1} parent=11 // pred_check_branch
          %284 = sbr.rel (%p282) target = $region40
        $region39: #{tpu_custom_call.1} parent=11 // pred_region
          _
        $region40: #{tpu_custom_call.1} parent=11 // pred_fallthru
          _
        // Predicated region
        $region41: #{tpu_custom_call.1} parent=11 // pred_check
          %p285 = pneg %p213
        $region42: #{tpu_custom_call.1} parent=11 // pred_check_branch
          %287 = sbr.rel (%p285) target = $region44
        $region43: #{tpu_custom_call.1} parent=11 // pred_region
          _
        $region44: #{tpu_custom_call.1} parent=11 // pred_fallthru
          _
      $region12: #{tpu_custom_call.1} parent=5 // pred_fallthru
        _
      %p288 = scmp.lt.s32.totalorder %s19, 2
      // Predicated region
      $region45: #{tpu_custom_call.1} parent=5 // pred_check
        %p289 = pneg %p288
      $region46: #{tpu_custom_call.1} parent=5 // pred_check_branch
        %291 = sbr.rel (%p289) target = $region48
      $region47: #{tpu_custom_call.1} parent=5 // pred_region
        // Predicated region
        $region49: #{tpu_custom_call.1} parent=47 // pred_check
          %p292 = pneg %p39
        $region50: #{tpu_custom_call.1} parent=47 // pred_check_branch
          %294 = sbr.rel (%p292) target = $region52
        $region51: #{tpu_custom_call.1} parent=47 // pred_region
          %s295 = sand.u32 %s29, 1
          %s296 = scalar_lea.sflag [#allocation3], %s295
          %s297 = sand.u32 %s29, 1
          %s298 = smul.addr %s297, 112
          %s299 = scalar_lea.vmem [#allocation2], %s298
          %s300 = smul.u32 2, %s19
          %s302 = ssub.s32 1792, 1792
          %303 = vsyncadd %s296, %s302
          %s304 = smul.addr %s300, 7
          %s305 = smul.addr %s304, 128
          %s306 = scalar_lea.hbm %s0, %s305
          %s307 = sshll.u32 %s299, 4
          %s308 = int_to_ptr.vmem [resolvable:$true] %s307
          %313 = dma.hbm_to_vmem [thread:$0]  %s306, 1792, %s308, %s296, 896, 896, 56
        $region52: #{tpu_custom_call.1} parent=47 // pred_fallthru
          _
      $region48: #{tpu_custom_call.1} parent=5 // pred_fallthru
        _
      %p314 = scmp.le.s32.totalorder 1, %s19
      %p315 = scmp.lt.s32.totalorder %s19, 3
      %p316 = pnand %p314, %p315
      %p317 = pneg %p316
      // Predicated region
      $region53: #{tpu_custom_call.1} parent=5 // pred_check
        _
      $region54: #{tpu_custom_call.1} parent=5 // pred_check_branch
        %319 = sbr.rel (%p316) target = $region56
      $region55: #{tpu_custom_call.1} parent=5 // pred_region
        %s320 = ssub.s32 %s19, 1
        %s321 = sand.u32 %s32, 1
        %s322 = scalar_lea.sflag [#allocation3], %s321
        %s323 = sand.u32 %s32, 1
        %s324 = smul.addr %s323, 112
        %s325 = scalar_lea.vmem [#allocation2], %s324
        // Predicated region
        $region57: #{tpu_custom_call.1} parent=55 // pred_check
          %p326 = pneg %p45
        $region58: #{tpu_custom_call.1} parent=55 // pred_check_branch
          %328 = sbr.rel (%p326) target = $region60
        $region59: #{tpu_custom_call.1} parent=55 // pred_region
          %329 = dma.done %s322, 1792
        $region60: #{tpu_custom_call.1} parent=55 // pred_fallthru
          _
        // Predicated region
        $region61: #{tpu_custom_call.1} parent=55 // pred_check
          %p330 = pneg %p66
        $region62: #{tpu_custom_call.1} parent=55 // pred_check_branch
          %332 = sbr.rel (%p330) target = $region64
        $region63: #{tpu_custom_call.1} parent=55 // pred_region
          %333 = dma.done [#allocation5], 12544
        $region64: #{tpu_custom_call.1} parent=55 // pred_fallthru
          _
        %s334 = sand.u32 %s32, 1
        %s335 = scalar_lea.sflag [#allocation3], %s334
        %s336 = sand.u32 %s32, 1
        %s337 = smul.addr %s336, 112
        %s338 = scalar_lea.vmem [#allocation2], %s337
        %p339 = pneg %p45
        %p340 = pneg %p42
        %p341 = pneg %p66
        %p342 = pneg %p63
        %p343 = pneg %p87
        %p344 = pneg %p84
        %p345 = pneg %p108
        %p346 = pneg %p105
        %p347 = pneg %p129
        %p348 = pneg %p126
        %p349 = pneg %p150
        %p350 = pneg %p147
        %p351 = pneg %p171
        %p352 = pneg %p168
        %p353 = pneg %p192
        %p354 = pneg %p189
        %p355 = pneg %p213
        %p356 = pneg %p210
        %p357 = pneg %p239
        %p358 = pneg %p236
        %s359 = smul.u32 2, %s24
        %p360 = scmp.lt.s32.totalorder %s359, 3
        %s361 = scalar_select %p360, %s359, 3
        %s362 = smul.addr %s361, 8
        %s363 = scalar_lea.vmem %s9, %s362
        %s364 = smul.u32 2, %s24
        %s365 = smul.u32 2, %s24
        %p366 = scmp.lt.s32.totalorder %s365, 3
        %s367 = scalar_select %p366, %s365, 3
        %s368 = smul.addr %s367, 8
        %s369 = scalar_lea.vmem %s9, %s368
        %s370 = smul.u32 2, %s24
        %v372 = vld [vmem:[%s325] sm:$0xff]
        %v373 = vld [vmem:[%s325 + $0x8] sm:$0xff]
        %v374 = vld [vmem:[%s325 + $0x10] sm:$0xff]
        %v375 = vld [vmem:[%s325 + $0x18] sm:$0xff]
        %v376 = vld [vmem:[%s325 + $0x20] sm:$0xff]
        %v377 = vld [vmem:[%s325 + $0x28] sm:$0xff]
        %v378 = vld [vmem:[%s325 + $0x30] sm:$0xff]
        %v379 = vld [vmem:[%s325 + $0x38] sm:$0xff]
        %v380 = vld [vmem:[%s325 + $0x40] sm:$0xff]
        %v381 = vld [vmem:[%s325 + $0x48] sm:$0xff]
        %v382 = vld [vmem:[%s325 + $0x50] sm:$0xff]
        %v383 = vld [vmem:[%s325 + $0x58] sm:$0xff]
        %v384 = vld [vmem:[%s325 + $0x60] sm:$0xff]
        %v385 = vld [vmem:[%s325 + $0x68] sm:$0xff]
        %v386 = vpack.c.bf16 %v379, %v372
        %v387 = vpack.c.bf16 %v380, %v373
        %v388 = vpack.c.bf16 %v381, %v374
        %v389 = vpack.c.bf16 %v382, %v375
        %v390 = vpack.c.bf16 %v383, %v376
        %v391 = vpack.c.bf16 %v384, %v377
        %v392 = vpack.c.bf16 %v385, %v378
        %v393 = vld [vmem:[#allocation4] sm:$0xff]
        %v394 = vld [vmem:[#allocation4 + $0x8] sm:$0xff]
        %v395 = vld [vmem:[#allocation4 + $0x10] sm:$0xff]
        %v396 = vld [vmem:[#allocation4 + $0x18] sm:$0xff]
        %v397 = vld [vmem:[#allocation4 + $0x20] sm:$0xff]
        %v398 = vld [vmem:[#allocation4 + $0x28] sm:$0xff]
        %v399 = vld [vmem:[#allocation4 + $0x30] sm:$0xff]
        %v400 = vld [vmem:[#allocation4 + $0x38] sm:$0xff]
        %v401 = vld [vmem:[#allocation4 + $0x40] sm:$0xff]
        %v402 = vld [vmem:[#allocation4 + $0x48] sm:$0xff]
        %v403 = vld [vmem:[#allocation4 + $0x50] sm:$0xff]
        %v404 = vld [vmem:[#allocation4 + $0x58] sm:$0xff]
        %v405 = vld [vmem:[#allocation4 + $0x60] sm:$0xff]
        %v406 = vld [vmem:[#allocation4 + $0x68] sm:$0xff]
        %v407 = vld [vmem:[#allocation4 + $0x70] sm:$0xff]
        %v408 = vld [vmem:[#allocation4 + $0x78] sm:$0xff]
        %v409 = vld [vmem:[#allocation4 + $0x80] sm:$0xff]
        %v410 = vld [vmem:[#allocation4 + $0x88] sm:$0xff]
        %v411 = vld [vmem:[#allocation4 + $0x90] sm:$0xff]
        %v412 = vld [vmem:[#allocation4 + $0x98] sm:$0xff]
        %v413 = vld [vmem:[#allocation4 + $0xa0] sm:$0xff]
        %v414 = vld [vmem:[#allocation4 + $0xa8] sm:$0xff]
        %v415 = vld [vmem:[#allocation4 + $0xb0] sm:$0xff]
        %v416 = vld [vmem:[#allocation4 + $0xb8] sm:$0xff]
        %v417 = vld [vmem:[#allocation4 + $0xc0] sm:$0xff]
        %v418 = vld [vmem:[#allocation4 + $0xc8] sm:$0xff]
        %v419 = vld [vmem:[#allocation4 + $0xd0] sm:$0xff]
        %v420 = vld [vmem:[#allocation4 + $0xd8] sm:$0xff]
        %v421 = vld [vmem:[#allocation4 + $0xe0] sm:$0xff]
        %v422 = vld [vmem:[#allocation4 + $0xe8] sm:$0xff]
        %v423 = vld [vmem:[#allocation4 + $0xf0] sm:$0xff]
        %v424 = vld [vmem:[#allocation4 + $0xf8] sm:$0xff]
        %v425 = vld [vmem:[#allocation4 + $0x100] sm:$0xff]
        %v426 = vld [vmem:[#allocation4 + $0x108] sm:$0xff]
        %v427 = vld [vmem:[#allocation4 + $0x110] sm:$0xff]
        %v428 = vld [vmem:[#allocation4 + $0x118] sm:$0xff]
        %v429 = vld [vmem:[#allocation4 + $0x120] sm:$0xff]
        %v430 = vld [vmem:[#allocation4 + $0x128] sm:$0xff]
        %v431 = vld [vmem:[#allocation4 + $0x130] sm:$0xff]
        %v432 = vld [vmem:[#allocation4 + $0x138] sm:$0xff]
        %v433 = vld [vmem:[#allocation4 + $0x140] sm:$0xff]
        %v434 = vld [vmem:[#allocation4 + $0x148] sm:$0xff]
        %v435 = vld [vmem:[#allocation4 + $0x150] sm:$0xff]
        %v436 = vld [vmem:[#allocation4 + $0x158] sm:$0xff]
        %v437 = vld [vmem:[#allocation4 + $0x160] sm:$0xff]
        %v438 = vld [vmem:[#allocation4 + $0x168] sm:$0xff]
        %v439 = vld [vmem:[#allocation4 + $0x170] sm:$0xff]
        %v440 = vld [vmem:[#allocation4 + $0x178] sm:$0xff]
        %v441 = vld [vmem:[#allocation4 + $0x180] sm:$0xff]
        %v442 = vld [vmem:[#allocation4 + $0x188] sm:$0xff]
        %v443 = vld [vmem:[#allocation4 + $0x190] sm:$0xff]
        %v444 = vld [vmem:[#allocation4 + $0x198] sm:$0xff]
        %v445 = vld [vmem:[#allocation4 + $0x1a0] sm:$0xff]
        %v446 = vld [vmem:[#allocation4 + $0x1a8] sm:$0xff]
        %v447 = vld [vmem:[#allocation4 + $0x1b0] sm:$0xff]
        %v448 = vld [vmem:[#allocation4 + $0x1b8] sm:$0xff]
        %v449 = vld [vmem:[#allocation4 + $0x1c0] sm:$0xff]
        %v450 = vld [vmem:[#allocation4 + $0x1c8] sm:$0xff]
        %v451 = vld [vmem:[#allocation4 + $0x1d0] sm:$0xff]
        %v452 = vld [vmem:[#allocation4 + $0x1d8] sm:$0xff]
        %v453 = vld [vmem:[#allocation4 + $0x1e0] sm:$0xff]
        %v454 = vld [vmem:[#allocation4 + $0x1e8] sm:$0xff]
        %v455 = vld [vmem:[#allocation4 + $0x1f0] sm:$0xff]
        %v456 = vld [vmem:[#allocation4 + $0x1f8] sm:$0xff]
        %v457 = vld [vmem:[#allocation4 + $0x200] sm:$0xff]
        %v458 = vld [vmem:[#allocation4 + $0x208] sm:$0xff]
        %v459 = vld [vmem:[#allocation4 + $0x210] sm:$0xff]
        %v460 = vld [vmem:[#allocation4 + $0x218] sm:$0xff]
        %v461 = vld [vmem:[#allocation4 + $0x220] sm:$0xff]
        %v462 = vld [vmem:[#allocation4 + $0x228] sm:$0xff]
        %v463 = vld [vmem:[#allocation4 + $0x230] sm:$0xff]
        %v464 = vld [vmem:[#allocation4 + $0x238] sm:$0xff]
        %v465 = vld [vmem:[#allocation4 + $0x240] sm:$0xff]
        %v466 = vld [vmem:[#allocation4 + $0x248] sm:$0xff]
        %v467 = vld [vmem:[#allocation4 + $0x250] sm:$0xff]
        %v468 = vld [vmem:[#allocation4 + $0x258] sm:$0xff]
        %v469 = vld [vmem:[#allocation4 + $0x260] sm:$0xff]
        %v470 = vld [vmem:[#allocation4 + $0x268] sm:$0xff]
        %v471 = vld [vmem:[#allocation4 + $0x270] sm:$0xff]
        %v472 = vld [vmem:[#allocation4 + $0x278] sm:$0xff]
        %v473 = vld [vmem:[#allocation4 + $0x280] sm:$0xff]
        %v474 = vld [vmem:[#allocation4 + $0x288] sm:$0xff]
        %v475 = vld [vmem:[#allocation4 + $0x290] sm:$0xff]
        %v476 = vld [vmem:[#allocation4 + $0x298] sm:$0xff]
        %v477 = vld [vmem:[#allocation4 + $0x2a0] sm:$0xff]
        %v478 = vld [vmem:[#allocation4 + $0x2a8] sm:$0xff]
        %v479 = vld [vmem:[#allocation4 + $0x2b0] sm:$0xff]
        %v480 = vld [vmem:[#allocation4 + $0x2b8] sm:$0xff]
        %v481 = vld [vmem:[#allocation4 + $0x2c0] sm:$0xff]
        %v482 = vld [vmem:[#allocation4 + $0x2c8] sm:$0xff]
        %v483 = vld [vmem:[#allocation4 + $0x2d0] sm:$0xff]
        %v484 = vld [vmem:[#allocation4 + $0x2d8] sm:$0xff]
        %v485 = vld [vmem:[#allocation4 + $0x2e0] sm:$0xff]
        %v486 = vld [vmem:[#allocation4 + $0x2e8] sm:$0xff]
        %v487 = vld [vmem:[#allocation4 + $0x2f0] sm:$0xff]
        %v488 = vld [vmem:[#allocation4 + $0x2f8] sm:$0xff]
        %v489 = vld [vmem:[#allocation4 + $0x300] sm:$0xff]
        %v490 = vld [vmem:[#allocation4 + $0x308] sm:$0xff]
        %v491 = vld [vmem:[%s2] sm:$0x3]
        %v493 = vlaneseq
        %v494 = vshrl.u32 %v493, 7
        %v495 = vsub.s32 0, %v494
        %v496 = vrot.slane %v491, %v495
        %v497 = vlaneseq
        %v498 = vshrl.u32 %v497, 7
        %v499 = vsub.s32 1, %v498
        %v500 = vrot.slane %v491, %v499
        %v601 = vunpack.c.l.b16 %v393
        %v602 = vunpack.c.h.b16 %v393
        %v603 = vunpack.c.l.b16 %v394
        %v604 = vunpack.c.h.b16 %v394
        %v605 = vunpack.c.l.b16 %v395
        %v606 = vunpack.c.h.b16 %v395
        %v607 = vunpack.c.l.b16 %v396
        %v608 = vunpack.c.h.b16 %v396
        %v609 = vunpack.c.l.b16 %v397
        %v610 = vunpack.c.h.b16 %v397
        %v611 = vunpack.c.l.b16 %v398
        %v612 = vunpack.c.h.b16 %v398
        %v613 = vunpack.c.l.b16 %v399
        %v614 = vunpack.c.h.b16 %v399
        %v615 = vunpack.c.l.b16 %v400
        %v616 = vunpack.c.h.b16 %v400
        %v617 = vunpack.c.l.b16 %v401
        %v618 = vunpack.c.h.b16 %v401
        %v619 = vunpack.c.l.b16 %v402
        %v620 = vunpack.c.h.b16 %v402
        %v621 = vunpack.c.l.b16 %v403
        %v622 = vunpack.c.h.b16 %v403
        %v623 = vunpack.c.l.b16 %v404
        %v624 = vunpack.c.h.b16 %v404
        %v625 = vunpack.c.l.b16 %v405
        %v626 = vunpack.c.h.b16 %v405
        %v627 = vunpack.c.l.b16 %v406
        %v628 = vunpack.c.h.b16 %v406
        %v629 = vunpack.c.l.b16 %v407
        %v630 = vunpack.c.h.b16 %v407
        %v631 = vunpack.c.l.b16 %v408
        %v632 = vunpack.c.h.b16 %v408
        %v633 = vunpack.c.l.b16 %v409
        %v634 = vunpack.c.h.b16 %v409
        %v635 = vunpack.c.l.b16 %v410
        %v636 = vunpack.c.h.b16 %v410
        %v637 = vunpack.c.l.b16 %v411
        %v638 = vunpack.c.h.b16 %v411
        %v639 = vunpack.c.l.b16 %v412
        %v640 = vunpack.c.h.b16 %v412
        %v641 = vunpack.c.l.b16 %v413
        %v642 = vunpack.c.h.b16 %v413
        %v643 = vunpack.c.l.b16 %v414
        %v644 = vunpack.c.h.b16 %v414
        %v645 = vunpack.c.l.b16 %v415
        %v646 = vunpack.c.h.b16 %v415
        %v647 = vunpack.c.l.b16 %v416
        %v648 = vunpack.c.h.b16 %v416
        %v649 = vunpack.c.l.b16 %v417
        %v650 = vunpack.c.h.b16 %v417
        %v651 = vunpack.c.l.b16 %v418
        %v652 = vunpack.c.h.b16 %v418
        %v653 = vunpack.c.l.b16 %v419
        %v654 = vunpack.c.h.b16 %v419
        %v655 = vunpack.c.l.b16 %v420
        %v656 = vunpack.c.h.b16 %v420
        %v657 = vunpack.c.l.b16 %v421
        %v658 = vunpack.c.h.b16 %v421
        %v659 = vunpack.c.l.b16 %v422
        %v660 = vunpack.c.h.b16 %v422
        %v661 = vunpack.c.l.b16 %v423
        %v662 = vunpack.c.h.b16 %v423
        %v663 = vunpack.c.l.b16 %v424
        %v664 = vunpack.c.h.b16 %v424
        %v665 = vunpack.c.l.b16 %v425
        %v666 = vunpack.c.h.b16 %v425
        %v667 = vunpack.c.l.b16 %v426
        %v668 = vunpack.c.h.b16 %v426
        %v669 = vunpack.c.l.b16 %v427
        %v670 = vunpack.c.h.b16 %v427
        %v671 = vunpack.c.l.b16 %v428
        %v672 = vunpack.c.h.b16 %v428
        %v673 = vunpack.c.l.b16 %v429
        %v674 = vunpack.c.h.b16 %v429
        %v675 = vunpack.c.l.b16 %v430
        %v676 = vunpack.c.h.b16 %v430
        %v677 = vunpack.c.l.b16 %v431
        %v678 = vunpack.c.h.b16 %v431
        %v679 = vunpack.c.l.b16 %v432
        %v680 = vunpack.c.h.b16 %v432
        %v681 = vunpack.c.l.b16 %v433
        %v682 = vunpack.c.h.b16 %v433
        %v683 = vunpack.c.l.b16 %v434
        %v684 = vunpack.c.h.b16 %v434
        %v685 = vunpack.c.l.b16 %v435
        %v686 = vunpack.c.h.b16 %v435
        %v687 = vunpack.c.l.b16 %v436
        %v688 = vunpack.c.h.b16 %v436
        %v689 = vunpack.c.l.b16 %v437
        %v690 = vunpack.c.h.b16 %v437
        %v691 = vunpack.c.l.b16 %v438
        %v692 = vunpack.c.h.b16 %v438
        %v693 = vunpack.c.l.b16 %v439
        %v694 = vunpack.c.h.b16 %v439
        %v695 = vunpack.c.l.b16 %v440
        %v696 = vunpack.c.h.b16 %v440
        %v697 = vunpack.c.l.b16 %v441
        %v698 = vunpack.c.h.b16 %v441
        %v699 = vunpack.c.l.b16 %v442
        %v700 = vunpack.c.h.b16 %v442
        %v701 = vunpack.c.l.b16 %v443
        %v702 = vunpack.c.h.b16 %v443
        %v703 = vunpack.c.l.b16 %v444
        %v704 = vunpack.c.h.b16 %v444
        %v705 = vunpack.c.l.b16 %v445
        %v706 = vunpack.c.h.b16 %v445
        %v707 = vunpack.c.l.b16 %v446
        %v708 = vunpack.c.h.b16 %v446
        %v709 = vunpack.c.l.b16 %v447
        %v710 = vunpack.c.h.b16 %v447
        %v711 = vunpack.c.l.b16 %v448
        %v712 = vunpack.c.h.b16 %v448
        %v713 = vunpack.c.l.b16 %v449
        %v714 = vunpack.c.h.b16 %v449
        %v715 = vunpack.c.l.b16 %v450
        %v716 = vunpack.c.h.b16 %v450
        %v717 = vunpack.c.l.b16 %v451
        %v718 = vunpack.c.h.b16 %v451
        %v719 = vunpack.c.l.b16 %v452
        %v720 = vunpack.c.h.b16 %v452
        %v721 = vunpack.c.l.b16 %v453
        %v722 = vunpack.c.h.b16 %v453
        %v723 = vunpack.c.l.b16 %v454
        %v724 = vunpack.c.h.b16 %v454
        %v725 = vunpack.c.l.b16 %v455
        %v726 = vunpack.c.h.b16 %v455
        %v727 = vunpack.c.l.b16 %v456
        %v728 = vunpack.c.h.b16 %v456
        %v729 = vunpack.c.l.b16 %v457
        %v730 = vunpack.c.h.b16 %v457
        %v731 = vunpack.c.l.b16 %v458
        %v732 = vunpack.c.h.b16 %v458
        %v733 = vunpack.c.l.b16 %v459
        %v734 = vunpack.c.h.b16 %v459
        %v735 = vunpack.c.l.b16 %v460
        %v736 = vunpack.c.h.b16 %v460
        %v737 = vunpack.c.l.b16 %v461
        %v738 = vunpack.c.h.b16 %v461
        %v739 = vunpack.c.l.b16 %v462
        %v740 = vunpack.c.h.b16 %v462
        %v741 = vunpack.c.l.b16 %v463
        %v742 = vunpack.c.h.b16 %v463
        %v743 = vunpack.c.l.b16 %v464
        %v744 = vunpack.c.h.b16 %v464
        %v745 = vunpack.c.l.b16 %v465
        %v746 = vunpack.c.h.b16 %v465
        %v747 = vunpack.c.l.b16 %v466
        %v748 = vunpack.c.h.b16 %v466
        %v749 = vunpack.c.l.b16 %v467
        %v750 = vunpack.c.h.b16 %v467
        %v751 = vunpack.c.l.b16 %v468
        %v752 = vunpack.c.h.b16 %v468
        %v753 = vunpack.c.l.b16 %v469
        %v754 = vunpack.c.h.b16 %v469
        %v755 = vunpack.c.l.b16 %v470
        %v756 = vunpack.c.h.b16 %v470
        %v757 = vunpack.c.l.b16 %v471
        %v758 = vunpack.c.h.b16 %v471
        %v759 = vunpack.c.l.b16 %v472
        %v760 = vunpack.c.h.b16 %v472
        %v761 = vunpack.c.l.b16 %v473
        %v762 = vunpack.c.h.b16 %v473
        %v763 = vunpack.c.l.b16 %v474
        %v764 = vunpack.c.h.b16 %v474
        %v765 = vunpack.c.l.b16 %v475
        %v766 = vunpack.c.h.b16 %v475
        %v767 = vunpack.c.l.b16 %v476
        %v768 = vunpack.c.h.b16 %v476
        %v769 = vunpack.c.l.b16 %v477
        %v770 = vunpack.c.h.b16 %v477
        %v771 = vunpack.c.l.b16 %v478
        %v772 = vunpack.c.h.b16 %v478
        %v773 = vunpack.c.l.b16 %v479
        %v774 = vunpack.c.h.b16 %v479
        %v775 = vunpack.c.l.b16 %v480
        %v776 = vunpack.c.h.b16 %v480
        %v777 = vunpack.c.l.b16 %v481
        %v778 = vunpack.c.h.b16 %v481
        %v779 = vunpack.c.l.b16 %v482
        %v780 = vunpack.c.h.b16 %v482
        %v781 = vunpack.c.l.b16 %v483
        %v782 = vunpack.c.h.b16 %v483
        %v783 = vunpack.c.l.b16 %v484
        %v784 = vunpack.c.h.b16 %v484
        %v785 = vunpack.c.l.b16 %v485
        %v786 = vunpack.c.h.b16 %v485
        %v787 = vunpack.c.l.b16 %v486
        %v788 = vunpack.c.h.b16 %v486
        %v789 = vunpack.c.l.b16 %v487
        %v790 = vunpack.c.h.b16 %v487
        %v791 = vunpack.c.l.b16 %v488
        %v792 = vunpack.c.h.b16 %v488
        %v793 = vunpack.c.l.b16 %v489
        %v794 = vunpack.c.h.b16 %v489
        %v795 = vunpack.c.l.b16 %v490
        %v796 = vunpack.c.h.b16 %v490
        %v797 = vpack.c.b16 %v603, %v601
        %v798 = vpack.c.b16 %v604, %v602
        %v799 = vpack.c.b16 %v607, %v605
        %v800 = vpack.c.b16 %v608, %v606
        %v801 = vpack.c.b16 %v611, %v609
        %v802 = vpack.c.b16 %v612, %v610
        %v803 = vpack.c.b16 %v615, %v613
        %v804 = vpack.c.b16 %v616, %v614
        %v805 = vpack.c.b16 %v619, %v617
        %v806 = vpack.c.b16 %v620, %v618
        %v807 = vpack.c.b16 %v623, %v621
        %v808 = vpack.c.b16 %v624, %v622
        %v809 = vpack.c.b16 %v627, %v625
        %v810 = vpack.c.b16 %v628, %v626
        %v811 = vpack.c.b16 %v631, %v629
        %v812 = vpack.c.b16 %v632, %v630
        %v813 = vpack.c.b16 %v635, %v633
        %v814 = vpack.c.b16 %v636, %v634
        %v815 = vpack.c.b16 %v639, %v637
        %v816 = vpack.c.b16 %v640, %v638
        %v817 = vpack.c.b16 %v643, %v641
        %v818 = vpack.c.b16 %v644, %v642
        %v819 = vpack.c.b16 %v647, %v645
        %v820 = vpack.c.b16 %v648, %v646
        %v821 = vpack.c.b16 %v651, %v649
        %v822 = vpack.c.b16 %v652, %v650
        %v823 = vpack.c.b16 %v655, %v653
        %v824 = vpack.c.b16 %v656, %v654
        %v825 = vpack.c.b16 %v659, %v657
        %v826 = vpack.c.b16 %v660, %v658
        %v827 = vpack.c.b16 %v663, %v661
        %v828 = vpack.c.b16 %v664, %v662
        %v829 = vpack.c.b16 %v667, %v665
        %v830 = vpack.c.b16 %v668, %v666
        %v831 = vpack.c.b16 %v671, %v669
        %v832 = vpack.c.b16 %v672, %v670
        %v833 = vpack.c.b16 %v675, %v673
        %v834 = vpack.c.b16 %v676, %v674
        %v835 = vpack.c.b16 %v679, %v677
        %v836 = vpack.c.b16 %v680, %v678
        %v837 = vpack.c.b16 %v683, %v681
        %v838 = vpack.c.b16 %v684, %v682
        %v839 = vpack.c.b16 %v687, %v685
        %v840 = vpack.c.b16 %v688, %v686
        %v841 = vpack.c.b16 %v691, %v689
        %v842 = vpack.c.b16 %v692, %v690
        %v843 = vpack.c.b16 %v695, %v693
        %v844 = vpack.c.b16 %v696, %v694
        %v845 = vpack.c.b16 %v699, %v697
        %v846 = vpack.c.b16 %v700, %v698
        %v847 = vpack.c.b16 %v703, %v701
        %v848 = vpack.c.b16 %v704, %v702
        %v849 = vpack.c.b16 %v707, %v705
        %v850 = vpack.c.b16 %v708, %v706
        %v851 = vpack.c.b16 %v711, %v709
        %v852 = vpack.c.b16 %v712, %v710
        %v853 = vpack.c.b16 %v715, %v713
        %v854 = vpack.c.b16 %v716, %v714
        %v855 = vpack.c.b16 %v719, %v717
        %v856 = vpack.c.b16 %v720, %v718
        %v857 = vpack.c.b16 %v723, %v721
        %v858 = vpack.c.b16 %v724, %v722
        %v859 = vpack.c.b16 %v727, %v725
        %v860 = vpack.c.b16 %v728, %v726
        %v861 = vpack.c.b16 %v731, %v729
        %v862 = vpack.c.b16 %v732, %v730
        %v863 = vpack.c.b16 %v735, %v733
        %v864 = vpack.c.b16 %v736, %v734
        %v865 = vpack.c.b16 %v739, %v737
        %v866 = vpack.c.b16 %v740, %v738
        %v867 = vpack.c.b16 %v743, %v741
        %v868 = vpack.c.b16 %v744, %v742
        %v869 = vpack.c.b16 %v747, %v745
        %v870 = vpack.c.b16 %v748, %v746
        %v871 = vpack.c.b16 %v751, %v749
        %v872 = vpack.c.b16 %v752, %v750
        %v873 = vpack.c.b16 %v755, %v753
        %v874 = vpack.c.b16 %v756, %v754
        %v875 = vpack.c.b16 %v759, %v757
        %v876 = vpack.c.b16 %v760, %v758
        %v877 = vpack.c.b16 %v763, %v761
        %v878 = vpack.c.b16 %v764, %v762
        %v879 = vpack.c.b16 %v767, %v765
        %v880 = vpack.c.b16 %v768, %v766
        %v881 = vpack.c.b16 %v771, %v769
        %v882 = vpack.c.b16 %v772, %v770
        %v883 = vpack.c.b16 %v775, %v773
        %v884 = vpack.c.b16 %v776, %v774
        %v885 = vpack.c.b16 %v779, %v777
        %v886 = vpack.c.b16 %v780, %v778
        %v887 = vpack.c.b16 %v783, %v781
        %v888 = vpack.c.b16 %v784, %v782
        %v889 = vpack.c.b16 %v787, %v785
        %v890 = vpack.c.b16 %v788, %v786
        %v891 = vpack.c.b16 %v791, %v789
        %v892 = vpack.c.b16 %v792, %v790
        %v893 = vpack.c.b16 %v795, %v793
        %v894 = vpack.c.b16 %v796, %v794
        %vm993 = vcmask 130048
        %v995 = vsel %vm993, %v392, 0
        %997 = vmatprep.subr.bf16.mxu0 %v798
        %998 = vmatpush1.bf16.msra.mxu0 %v797
        %999 = vmatprep.subr.bf16.mxu0 %v800
        %1000 = vmatpush1.bf16.msra.mxu0 %v799
        %1001 = vmatprep.subr.bf16.mxu0 %v802
        %1002 = vmatpush1.bf16.msra.mxu0 %v801
        %1003 = vmatprep.subr.bf16.mxu0 %v804
        %1004 = vmatpush1.bf16.msra.mxu0 %v803
        %1005 = vmatprep.subr.bf16.mxu0 %v806
        %1006 = vmatpush1.bf16.msra.mxu0 %v805
        %1007 = vmatprep.subr.bf16.mxu0 %v808
        %1008 = vmatpush1.bf16.msra.mxu0 %v807
        %1009 = vmatprep.subr.bf16.mxu0 %v810
        %1010 = vmatpush1.bf16.msra.mxu0 %v809
        %1011 = vmatprep.subr.bf16.mxu0 %v812
        %1012 = vmatpush1.bf16.msra.mxu0 %v811
        %1013 = vmatprep.subr.bf16.mxu0 %v814
        %1014 = vmatpush1.bf16.msra.mxu0 %v813
        %1015 = vmatprep.subr.bf16.mxu0 %v816
        %1016 = vmatpush1.bf16.msra.mxu0 %v815
        %1017 = vmatprep.subr.bf16.mxu0 %v818
        %1018 = vmatpush1.bf16.msra.mxu0 %v817
        %1019 = vmatprep.subr.bf16.mxu0 %v820
        %1020 = vmatpush1.bf16.msra.mxu0 %v819
        %1021 = vmatprep.subr.bf16.mxu0 %v822
        %1022 = vmatpush1.bf16.msra.mxu0 %v821
        %1023 = vmatprep.subr.bf16.mxu0 %v824
        %1024 = vmatpush1.bf16.msra.mxu0 %v823
        %1025 = vmatprep.subr.bf16.mxu0 %v826
        %1026 = vmatpush1.bf16.msra.mxu0 %v825
        %1027 = vmatprep.subr.bf16.mxu0 %v828
        %1028 = vmatpush1.bf16.msra.mxu0 %v827
        %1029 = vmatprep.mubr.bf16.mxu0 %v387
        %1030 = vmatmul.mubr.bf16.gmra.mrb[0].mxu0 %v386
        %v1031 = vpop.f32.mrb[0].mxu0
        %v1032 = vadd.f32 %v496, %v1031
        %v1033 = vpop.f32.mrb[0].mxu0
        %v1034 = vadd.f32 %v500, %v1033
        %v1035 = vpop.f32.mrb[0].mxu0
        %v1036 = vadd.f32 %v496, %v1035
        %v1037 = vpop.f32.mrb[0].mxu0
        %v1038 = vadd.f32 %v500, %v1037
        %1039 = vdwg.mxu0
        %1040 = vmatprep.subr.bf16.mxu0 %v830
        %1041 = vmatpush1.bf16.msra.mxu0 %v829
        %1042 = vmatprep.subr.bf16.mxu0 %v832
        %1043 = vmatpush1.bf16.msra.mxu0 %v831
        %1044 = vmatprep.subr.bf16.mxu0 %v834
        %1045 = vmatpush1.bf16.msra.mxu0 %v833
        %1046 = vmatprep.subr.bf16.mxu0 %v836
        %1047 = vmatpush1.bf16.msra.mxu0 %v835
        %1048 = vmatprep.subr.bf16.mxu0 %v838
        %1049 = vmatpush1.bf16.msra.mxu0 %v837
        %1050 = vmatprep.subr.bf16.mxu0 %v840
        %1051 = vmatpush1.bf16.msra.mxu0 %v839
        %1052 = vmatprep.subr.bf16.mxu0 %v842
        %1053 = vmatpush1.bf16.msra.mxu0 %v841
        %1054 = vmatprep.subr.bf16.mxu0 %v844
        %1055 = vmatpush1.bf16.msra.mxu0 %v843
        %1056 = vmatprep.subr.bf16.mxu0 %v846
        %1057 = vmatpush1.bf16.msra.mxu0 %v845
        %1058 = vmatprep.subr.bf16.mxu0 %v848
        %1059 = vmatpush1.bf16.msra.mxu0 %v847
        %1060 = vmatprep.subr.bf16.mxu0 %v850
        %1061 = vmatpush1.bf16.msra.mxu0 %v849
        %1062 = vmatprep.subr.bf16.mxu0 %v852
        %1063 = vmatpush1.bf16.msra.mxu0 %v851
        %1064 = vmatprep.subr.bf16.mxu0 %v854
        %1065 = vmatpush1.bf16.msra.mxu0 %v853
        %1066 = vmatprep.subr.bf16.mxu0 %v856
        %1067 = vmatpush1.bf16.msra.mxu0 %v855
        %1068 = vmatprep.subr.bf16.mxu0 %v858
        %1069 = vmatpush1.bf16.msra.mxu0 %v857
        %1070 = vmatprep.subr.bf16.mxu0 %v860
        %1071 = vmatpush1.bf16.msra.mxu0 %v859
        %1072 = vmatprep.mubr.bf16.mxu0 %v389
        %1073 = vmatmul.mubr.bf16.gmra.mrb[0].mxu0 %v388
        %v1074 = vpop.f32.mrb[0].mxu0
        %v1075 = vadd.f32 %v1032, %v1074
        %v1076 = vpop.f32.mrb[0].mxu0
        %v1077 = vadd.f32 %v1034, %v1076
        %v1078 = vpop.f32.mrb[0].mxu0
        %v1079 = vadd.f32 %v1036, %v1078
        %v1080 = vpop.f32.mrb[0].mxu0
        %v1081 = vadd.f32 %v1038, %v1080
        %1082 = vdwg.mxu0
        %1083 = vmatprep.subr.bf16.mxu0 %v862
        %1084 = vmatpush1.bf16.msra.mxu0 %v861
        %1085 = vmatprep.subr.bf16.mxu0 %v864
        %1086 = vmatpush1.bf16.msra.mxu0 %v863
        %1087 = vmatprep.subr.bf16.mxu0 %v866
        %1088 = vmatpush1.bf16.msra.mxu0 %v865
        %1089 = vmatprep.subr.bf16.mxu0 %v868
        %1090 = vmatpush1.bf16.msra.mxu0 %v867
        %1091 = vmatprep.subr.bf16.mxu0 %v870
        %1092 = vmatpush1.bf16.msra.mxu0 %v869
        %1093 = vmatprep.subr.bf16.mxu0 %v872
        %1094 = vmatpush1.bf16.msra.mxu0 %v871
        %1095 = vmatprep.subr.bf16.mxu0 %v874
        %1096 = vmatpush1.bf16.msra.mxu0 %v873
        %1097 = vmatprep.subr.bf16.mxu0 %v876
        %1098 = vmatpush1.bf16.msra.mxu0 %v875
        %1099 = vmatprep.subr.bf16.mxu0 %v878
        %1100 = vmatpush1.bf16.msra.mxu0 %v877
        %1101 = vmatprep.subr.bf16.mxu0 %v880
        %1102 = vmatpush1.bf16.msra.mxu0 %v879
        %1103 = vmatprep.subr.bf16.mxu0 %v882
        %1104 = vmatpush1.bf16.msra.mxu0 %v881
        %1105 = vmatprep.subr.bf16.mxu0 %v884
        %1106 = vmatpush1.bf16.msra.mxu0 %v883
        %1107 = vmatprep.subr.bf16.mxu0 %v886
        %1108 = vmatpush1.bf16.msra.mxu0 %v885
        %1109 = vmatprep.subr.bf16.mxu0 %v888
        %1110 = vmatpush1.bf16.msra.mxu0 %v887
        %1111 = vmatprep.subr.bf16.mxu0 %v890
        %1112 = vmatpush1.bf16.msra.mxu0 %v889
        %1113 = vmatprep.subr.bf16.mxu0 %v892
        %1114 = vmatpush1.bf16.msra.mxu0 %v891
        %1115 = vmatprep.mubr.bf16.mxu0 %v391
        %1116 = vmatmul.mubr.bf16.gmra.mrb[0].mxu0 %v390
        %v1117 = vpop.f32.mrb[0].mxu0
        %v1118 = vadd.f32 %v1075, %v1117
        %v1119 = vpop.f32.mrb[0].mxu0
        %v1120 = vadd.f32 %v1077, %v1119
        %v1121 = vpop.f32.mrb[0].mxu0
        %v1122 = vadd.f32 %v1079, %v1121
        %v1123 = vpop.f32.mrb[0].mxu0
        %v1124 = vadd.f32 %v1081, %v1123
        %1125 = vdwg.mxu0
        %1126 = vmatprep.subr.bf16.mxu0 %v894
        %1127 = vmatpush1.bf16.msra.mxu0 %v893
        %1128 = vmatprep.subr.bf16.mxu0 0
        %1129 = vmatpush1.bf16.msra.mxu0 0
        %1130 = vmatprep.subr.bf16.mxu0 0
        %1131 = vmatpush1.bf16.msra.mxu0 0
        %1132 = vmatprep.subr.bf16.mxu0 0
        %1133 = vmatpush1.bf16.msra.mxu0 0
        %1134 = vmatprep.subr.bf16.mxu0 0
        %1135 = vmatpush1.bf16.msra.mxu0 0
        %1136 = vmatprep.subr.bf16.mxu0 0
        %1137 = vmatpush1.bf16.msra.mxu0 0
        %1138 = vmatprep.subr.bf16.mxu0 0
        %1139 = vmatpush1.bf16.msra.mxu0 0
        %1140 = vmatprep.subr.bf16.mxu0 0
        %1141 = vmatpush1.bf16.msra.mxu0 0
        %1142 = vmatprep.subr.bf16.mxu0 0
        %1143 = vmatpush1.bf16.msra.mxu0 0
        %1144 = vmatprep.subr.bf16.mxu0 0
        %1145 = vmatpush1.bf16.msra.mxu0 0
        %1146 = vmatprep.subr.bf16.mxu0 0
        %1147 = vmatpush1.bf16.msra.mxu0 0
        %1148 = vmatprep.subr.bf16.mxu0 0
        %1149 = vmatpush1.bf16.msra.mxu0 0
        %1150 = vmatprep.subr.bf16.mxu0 0
        %1151 = vmatpush1.bf16.msra.mxu0 0
        %1152 = vmatprep.subr.bf16.mxu0 0
        %1153 = vmatpush1.bf16.msra.mxu0 0
        %1154 = vmatprep.subr.bf16.mxu0 0
        %1155 = vmatpush1.bf16.msra.mxu0 0
        %1156 = vmatprep.subr.bf16.mxu0 0
        %1157 = vmatpush1.bf16.msra.mxu0 0
        %1158 = vmatprep.mubr.bf16.mxu0 0
        %1159 = vmatmul.mubr.bf16.gmra.mrb[0].mxu0 %v995
        %v1160 = vpop.f32.mrb[0].mxu0
        %v1161 = vadd.f32 %v1118, %v1160
        %v1162 = vpop.f32.mrb[0].mxu0
        %v1163 = vadd.f32 %v1120, %v1162
        %v1164 = vpop.f32.mrb[0].mxu0
        %v1165 = vadd.f32 %v1122, %v1164
        %v1166 = vpop.f32.mrb[0].mxu0
        %v1167 = vadd.f32 %v1124, %v1166
        %1168 = vdwg.mxu0
        %v1169 = vmax.f32 %v1161, 0.0
        %v1170 = vmax.f32 %v1163, 0.0
        %v1171 = vmax.f32 %v1165, 0.0
        %v1172 = vmax.f32 %v1167, 0.0
        %v1173 = vpack.c.bf16 %v1171, %v1169
        %v1174 = vpack.c.bf16 %v1172, %v1170
        %v1175 = vld [vmem:[%s3] sm:$0xf]
        %v1176 = vld [vmem:[%s3 + $0x4] sm:$0xf]
        %v1177 = vld [vmem:[%s3 + $0x8] sm:$0xf]
        %v1178 = vld [vmem:[%s3 + $0xc] sm:$0xf]
        %v1179 = vld [vmem:[%s3 + $0x10] sm:$0xf]
        %v1180 = vld [vmem:[%s3 + $0x14] sm:$0xf]
        %v1181 = vld [vmem:[%s3 + $0x18] sm:$0xf]
        %v1182 = vld [vmem:[%s3 + $0x1c] sm:$0xf]
        %v1183 = vld [vmem:[%s3 + $0x20] sm:$0xf]
        %v1184 = vld [vmem:[%s3 + $0x24] sm:$0xf]
        %v1185 = vld [vmem:[%s3 + $0x28] sm:$0xf]
        %v1186 = vld [vmem:[%s3 + $0x2c] sm:$0xf]
        %v1187 = vld [vmem:[%s3 + $0x30] sm:$0xf]
        %v1188 = vld [vmem:[%s3 + $0x34] sm:$0xf]
        %v1189 = vld [vmem:[%s3 + $0x38] sm:$0xf]
        %v1190 = vld [vmem:[%s3 + $0x3c] sm:$0xf]
        %v1191 = vld [vmem:[%s3 + $0x40] sm:$0xf]
        %v1192 = vld [vmem:[%s3 + $0x44] sm:$0xf]
        %v1193 = vld [vmem:[%s3 + $0x48] sm:$0xf]
        %v1194 = vld [vmem:[%s3 + $0x4c] sm:$0xf]
        %v1195 = vld [vmem:[%s3 + $0x50] sm:$0xf]
        %v1196 = vld [vmem:[%s3 + $0x54] sm:$0xf]
        %v1197 = vld [vmem:[%s3 + $0x58] sm:$0xf]
        %v1198 = vld [vmem:[%s3 + $0x5c] sm:$0xf]
        %v1199 = vld [vmem:[%s3 + $0x60] sm:$0xf]
        %v1200 = vld [vmem:[%s3 + $0x64] sm:$0xf]
        %v1201 = vld [vmem:[%s3 + $0x68] sm:$0xf]
        %v1202 = vld [vmem:[%s3 + $0x6c] sm:$0xf]
        %v1203 = vld [vmem:[%s3 + $0x70] sm:$0xf]
        %v1204 = vld [vmem:[%s3 + $0x74] sm:$0xf]
        %v1205 = vld [vmem:[%s3 + $0x78] sm:$0xf]
        %v1206 = vld [vmem:[%s3 + $0x7c] sm:$0xf]
        %v1207 = vld [vmem:[%s4] sm:$0x1]
        %v1209 = vlaneseq
        %v1210 = vshrl.u32 %v1209, 7
        %v1211 = vsub.s32 0, %v1210
        %v1212 = vrot.slane %v1207, %v1211
        %v1246 = vunpack.c.l.b16 %v1175
        %v1247 = vunpack.c.l.b16 %v1176
        %v1248 = vunpack.c.l.b16 %v1177
        %v1249 = vunpack.c.l.b16 %v1178
        %v1250 = vunpack.c.l.b16 %v1179
        %v1251 = vunpack.c.l.b16 %v1180
        %v1252 = vunpack.c.l.b16 %v1181
        %v1253 = vunpack.c.l.b16 %v1182
        %v1254 = vunpack.c.l.b16 %v1183
        %v1255 = vunpack.c.l.b16 %v1184
        %v1256 = vunpack.c.l.b16 %v1185
        %v1257 = vunpack.c.l.b16 %v1186
        %v1258 = vunpack.c.l.b16 %v1187
        %v1259 = vunpack.c.l.b16 %v1188
        %v1260 = vunpack.c.l.b16 %v1189
        %v1261 = vunpack.c.l.b16 %v1190
        %v1262 = vunpack.c.l.b16 %v1191
        %v1263 = vunpack.c.l.b16 %v1192
        %v1264 = vunpack.c.l.b16 %v1193
        %v1265 = vunpack.c.l.b16 %v1194
        %v1266 = vunpack.c.l.b16 %v1195
        %v1267 = vunpack.c.l.b16 %v1196
        %v1268 = vunpack.c.l.b16 %v1197
        %v1269 = vunpack.c.l.b16 %v1198
        %v1270 = vunpack.c.l.b16 %v1199
        %v1271 = vunpack.c.l.b16 %v1200
        %v1272 = vunpack.c.l.b16 %v1201
        %v1273 = vunpack.c.l.b16 %v1202
        %v1274 = vunpack.c.l.b16 %v1203
        %v1275 = vunpack.c.l.b16 %v1204
        %v1276 = vunpack.c.l.b16 %v1205
        %v1277 = vunpack.c.l.b16 %v1206
        %v1278 = vpack.c.b16 %v1247, %v1246
        %v1279 = vpack.c.b16 %v1249, %v1248
        %v1280 = vpack.c.b16 %v1251, %v1250
        %v1281 = vpack.c.b16 %v1253, %v1252
        %v1282 = vpack.c.b16 %v1255, %v1254
        %v1283 = vpack.c.b16 %v1257, %v1256
        %v1284 = vpack.c.b16 %v1259, %v1258
        %v1285 = vpack.c.b16 %v1261, %v1260
        %v1286 = vpack.c.b16 %v1263, %v1262
        %v1287 = vpack.c.b16 %v1265, %v1264
        %v1288 = vpack.c.b16 %v1267, %v1266
        %v1289 = vpack.c.b16 %v1269, %v1268
        %v1290 = vpack.c.b16 %v1271, %v1270
        %v1291 = vpack.c.b16 %v1273, %v1272
        %v1292 = vpack.c.b16 %v1275, %v1274
        %v1293 = vpack.c.b16 %v1277, %v1276
        %1310 = vmatprep.subr.bf16.mxu0 0
        %1311 = vmatpush1.bf16.msra.mxu0 %v1278
        %1312 = vmatprep.subr.bf16.mxu0 0
        %1313 = vmatpush1.bf16.msra.mxu0 %v1279
        %1314 = vmatprep.subr.bf16.mxu0 0
        %1315 = vmatpush1.bf16.msra.mxu0 %v1280
        %1316 = vmatprep.subr.bf16.mxu0 0
        %1317 = vmatpush1.bf16.msra.mxu0 %v1281
        %1318 = vmatprep.subr.bf16.mxu0 0
        %1319 = vmatpush1.bf16.msra.mxu0 %v1282
        %1320 = vmatprep.subr.bf16.mxu0 0
        %1321 = vmatpush1.bf16.msra.mxu0 %v1283
        %1322 = vmatprep.subr.bf16.mxu0 0
        %1323 = vmatpush1.bf16.msra.mxu0 %v1284
        %1324 = vmatprep.subr.bf16.mxu0 0
        %1325 = vmatpush1.bf16.msra.mxu0 %v1285
        %1326 = vmatprep.subr.bf16.mxu0 0
        %1327 = vmatpush1.bf16.msra.mxu0 %v1286
        %1328 = vmatprep.subr.bf16.mxu0 0
        %1329 = vmatpush1.bf16.msra.mxu0 %v1287
        %1330 = vmatprep.subr.bf16.mxu0 0
        %1331 = vmatpush1.bf16.msra.mxu0 %v1288
        %1332 = vmatprep.subr.bf16.mxu0 0
        %1333 = vmatpush1.bf16.msra.mxu0 %v1289
        %1334 = vmatprep.subr.bf16.mxu0 0
        %1335 = vmatpush1.bf16.msra.mxu0 %v1290
        %1336 = vmatprep.subr.bf16.mxu0 0
        %1337 = vmatpush1.bf16.msra.mxu0 %v1291
        %1338 = vmatprep.subr.bf16.mxu0 0
        %1339 = vmatpush1.bf16.msra.mxu0 %v1292
        %1340 = vmatprep.subr.bf16.mxu0 0
        %1341 = vmatpush1.bf16.msra.mxu0 %v1293
        %1342 = vmatprep.mubr.bf16.mxu0 %v1174
        %1343 = vmatmul.mubr.bf16.gmra.mrb[0].mxu0 %v1173
        %v1344 = vpop.f32.mrb[0].mxu0
        %v1345 = vadd.f32 %v1212, %v1344
        %v1346 = vpop.f32.mrb[0].mxu0
        %v1347 = vpop.f32.mrb[0].mxu0
        %v1348 = vadd.f32 %v1212, %v1347
        %v1349 = vpop.f32.mrb[0].mxu0
        %1350 = vdwg.mxu0
        %v1351 = vmax.f32 %v1345, 0.0
        %v1352 = vmax.f32 %v1348, 0.0
        %v1353 = vpack.c.bf16 %v1352, %v1351
        %v1354 = vld [vmem:[%s5] sm:$0xf]
        %v1355 = vld [vmem:[%s5 + $0x4] sm:$0xf]
        %v1356 = vld [vmem:[%s5 + $0x8] sm:$0xf]
        %v1357 = vld [vmem:[%s5 + $0xc] sm:$0xf]
        %v1358 = vld [vmem:[%s5 + $0x10] sm:$0xf]
        %v1359 = vld [vmem:[%s5 + $0x14] sm:$0xf]
        %v1360 = vld [vmem:[%s5 + $0x18] sm:$0xf]
        %v1361 = vld [vmem:[%s5 + $0x1c] sm:$0xf]
        %v1362 = vld [vmem:[%s5 + $0x20] sm:$0xf]
        %v1363 = vld [vmem:[%s5 + $0x24] sm:$0xf]
        %v1364 = vld [vmem:[%s5 + $0x28] sm:$0xf]
        %v1365 = vld [vmem:[%s5 + $0x2c] sm:$0xf]
        %v1366 = vld [vmem:[%s5 + $0x30] sm:$0xf]
        %v1367 = vld [vmem:[%s5 + $0x34] sm:$0xf]
        %v1368 = vld [vmem:[%s5 + $0x38] sm:$0xf]
        %v1369 = vld [vmem:[%s5 + $0x3c] sm:$0xf]
        %v1370 = vld [vmem:[%s6] sm:$0x1]
        %v1372 = vlaneseq
        %v1373 = vshrl.u32 %v1372, 7
        %v1374 = vsub.s32 0, %v1373
        %v1375 = vrot.slane %v1370, %v1374
        %v1393 = vunpack.c.l.b16 %v1354
        %v1394 = vunpack.c.l.b16 %v1355
        %v1395 = vunpack.c.l.b16 %v1356
        %v1396 = vunpack.c.l.b16 %v1357
        %v1397 = vunpack.c.l.b16 %v1358
        %v1398 = vunpack.c.l.b16 %v1359
        %v1399 = vunpack.c.l.b16 %v1360
        %v1400 = vunpack.c.l.b16 %v1361
        %v1401 = vunpack.c.l.b16 %v1362
        %v1402 = vunpack.c.l.b16 %v1363
        %v1403 = vunpack.c.l.b16 %v1364
        %v1404 = vunpack.c.l.b16 %v1365
        %v1405 = vunpack.c.l.b16 %v1366
        %v1406 = vunpack.c.l.b16 %v1367
        %v1407 = vunpack.c.l.b16 %v1368
        %v1408 = vunpack.c.l.b16 %v1369
        %v1409 = vpack.c.b16 %v1394, %v1393
        %v1410 = vpack.c.b16 %v1396, %v1395
        %v1411 = vpack.c.b16 %v1398, %v1397
        %v1412 = vpack.c.b16 %v1400, %v1399
        %v1413 = vpack.c.b16 %v1402, %v1401
        %v1414 = vpack.c.b16 %v1404, %v1403
        %v1415 = vpack.c.b16 %v1406, %v1405
        %v1416 = vpack.c.b16 %v1408, %v1407
        %1425 = vmatprep.subr.bf16.mxu0 0
        %1426 = vmatpush1.bf16.msra.mxu0 %v1409
        %1427 = vmatprep.subr.bf16.mxu0 0
        %1428 = vmatpush1.bf16.msra.mxu0 %v1410
        %1429 = vmatprep.subr.bf16.mxu0 0
        %1430 = vmatpush1.bf16.msra.mxu0 %v1411
        %1431 = vmatprep.subr.bf16.mxu0 0
        %1432 = vmatpush1.bf16.msra.mxu0 %v1412
        %1433 = vmatprep.subr.bf16.mxu0 0
        %1434 = vmatpush1.bf16.msra.mxu0 %v1413
        %1435 = vmatprep.subr.bf16.mxu0 0
        %1436 = vmatpush1.bf16.msra.mxu0 %v1414
        %1437 = vmatprep.subr.bf16.mxu0 0
        %1438 = vmatpush1.bf16.msra.mxu0 %v1415
        %1439 = vmatprep.subr.bf16.mxu0 0
        %1440 = vmatpush1.bf16.msra.mxu0 %v1416
        %1441 = vmatprep.subr.bf16.mxu0 0
        %1442 = vmatpush1.bf16.msra.mxu0 0
        %1443 = vmatprep.subr.bf16.mxu0 0
        %1444 = vmatpush1.bf16.msra.mxu0 0
        %1445 = vmatprep.subr.bf16.mxu0 0
        %1446 = vmatpush1.bf16.msra.mxu0 0
        %1447 = vmatprep.subr.bf16.mxu0 0
        %1448 = vmatpush1.bf16.msra.mxu0 0
        %1449 = vmatprep.subr.bf16.mxu0 0
        %1450 = vmatpush1.bf16.msra.mxu0 0
        %1451 = vmatprep.subr.bf16.mxu0 0
        %1452 = vmatpush1.bf16.msra.mxu0 0
        %1453 = vmatprep.subr.bf16.mxu0 0
        %1454 = vmatpush1.bf16.msra.mxu0 0
        %1455 = vmatprep.subr.bf16.mxu0 0
        %1456 = vmatpush1.bf16.msra.mxu0 0
        %1457 = vmatprep.mubr.bf16.mxu0 0
        %1458 = vmatmul.mubr.bf16.gmra.mrb[0].mxu0 %v1353
        %v1459 = vpop.f32.mrb[0].mxu0
        %v1460 = vadd.f32 %v1375, %v1459
        %v1461 = vpop.f32.mrb[0].mxu0
        %v1462 = vpop.f32.mrb[0].mxu0
        %v1463 = vadd.f32 %v1375, %v1462
        %v1464 = vpop.f32.mrb[0].mxu0
        %1465 = vdwg.mxu0
        %v1466 = vmax.f32 %v1460, 0.0
        %v1467 = vmax.f32 %v1463, 0.0
        %v1468 = vpack.c.bf16 %v1467, %v1466
        %v1469 = vld [vmem:[%s7] sm:$0xf]
        %v1470 = vld [vmem:[%s7 + $0x4] sm:$0xf]
        %v1471 = vld [vmem:[%s7 + $0x8] sm:$0xf]
        %v1472 = vld [vmem:[%s7 + $0xc] sm:$0xf]
        %v1473 = vld [vmem:[%s7 + $0x10] sm:$0xf]
        %v1474 = vld [vmem:[%s7 + $0x14] sm:$0xf]
        %v1475 = vld [vmem:[%s7 + $0x18] sm:$0xf]
        %v1476 = vld [vmem:[%s7 + $0x1c] sm:$0xf]
        %v1477 = vld [vmem:[%s8] sm:$0x1]
        %v1479 = vlaneseq
        %v1480 = vshrl.u32 %v1479, 7
        %v1481 = vsub.s32 0, %v1480
        %v1482 = vrot.slane %v1477, %v1481
        %v1492 = vunpack.c.l.b16 %v1469
        %v1493 = vunpack.c.l.b16 %v1470
        %v1494 = vunpack.c.l.b16 %v1471
        %v1495 = vunpack.c.l.b16 %v1472
        %v1496 = vunpack.c.l.b16 %v1473
        %v1497 = vunpack.c.l.b16 %v1474
        %v1498 = vunpack.c.l.b16 %v1475
        %v1499 = vunpack.c.l.b16 %v1476
        %v1500 = vpack.c.b16 %v1493, %v1492
        %v1501 = vpack.c.b16 %v1495, %v1494
        %v1502 = vpack.c.b16 %v1497, %v1496
        %v1503 = vpack.c.b16 %v1499, %v1498
        %vm1508 = vcmask 523264
        %v1510 = vsel %vm1508, %v1468, 0
        %1512 = vmatprep.subr.bf16.mxu0 0
        %1513 = vmatpush1.bf16.msra.mxu0 %v1500
        %1514 = vmatprep.subr.bf16.mxu0 0
        %1515 = vmatpush1.bf16.msra.mxu0 %v1501
        %1516 = vmatprep.subr.bf16.mxu0 0
        %1517 = vmatpush1.bf16.msra.mxu0 %v1502
        %1518 = vmatprep.subr.bf16.mxu0 0
        %1519 = vmatpush1.bf16.msra.mxu0 %v1503
        %1520 = vmatprep.subr.bf16.mxu0 0
        %1521 = vmatpush1.bf16.msra.mxu0 0
        %1522 = vmatprep.subr.bf16.mxu0 0
        %1523 = vmatpush1.bf16.msra.mxu0 0
        %1524 = vmatprep.subr.bf16.mxu0 0
        %1525 = vmatpush1.bf16.msra.mxu0 0
        %1526 = vmatprep.subr.bf16.mxu0 0
        %1527 = vmatpush1.bf16.msra.mxu0 0
        %1528 = vmatprep.subr.bf16.mxu0 0
        %1529 = vmatpush1.bf16.msra.mxu0 0
        %1530 = vmatprep.subr.bf16.mxu0 0
        %1531 = vmatpush1.bf16.msra.mxu0 0
        %1532 = vmatprep.subr.bf16.mxu0 0
        %1533 = vmatpush1.bf16.msra.mxu0 0
        %1534 = vmatprep.subr.bf16.mxu0 0
        %1535 = vmatpush1.bf16.msra.mxu0 0
        %1536 = vmatprep.subr.bf16.mxu0 0
        %1537 = vmatpush1.bf16.msra.mxu0 0
        %1538 = vmatprep.subr.bf16.mxu0 0
        %1539 = vmatpush1.bf16.msra.mxu0 0
        %1540 = vmatprep.subr.bf16.mxu0 0
        %1541 = vmatpush1.bf16.msra.mxu0 0
        %1542 = vmatprep.subr.bf16.mxu0 0
        %1543 = vmatpush1.bf16.msra.mxu0 0
        %1544 = vmatprep.mubr.bf16.mxu0 0
        %1545 = vmatmul.mubr.bf16.gmra.mrb[0].mxu0 %v1510
        %v1546 = vpop.f32.mrb[0].mxu0
        %v1547 = vadd.f32 %v1482, %v1546
        %v1548 = vpop.f32.mrb[0].mxu0
        %v1549 = vpop.f32.mrb[0].mxu0
        %v1550 = vadd.f32 %v1482, %v1549
        %v1551 = vpop.f32.mrb[0].mxu0
        %1552 = vdwg.mxu0
        %vm1553 = vcmask 80896
        %v1554 = vsel %vm1553, %v1547, -inf
        %1555 = vmax.xlane.f32.xlu0 %v1554
        %v1556 = vpop.xlane.xlu0 %1555
        %v1557 = vsel %vm1553, %v1550, -inf
        %1558 = vmax.xlane.f32.xlu0 %v1557
        %v1559 = vpop.xlane.xlu0 %1558
        %v1560 = vsub.f32 %v1547, %v1556
        %v1561 = vsub.f32 %v1550, %v1559
        %v1562 = vmul.f32 %v1560, 1.442695
        %v1563 = vpow.pop %v1562
        %v1564 = vmul.f32 %v1561, 1.442695
        %v1565 = vpow.pop %v1564
        %v1566 = vsel %vm1553, %v1563, 0.0
        %1567 = vadd.xlane.f32.xlu0 %v1566
        %v1568 = vpop.xlane.xlu0 %1567
        %v1569 = vsel %vm1553, %v1565, 0.0
        %1570 = vadd.xlane.f32.xlu0 %v1569
        %v1571 = vpop.xlane.xlu0 %1570
        %v1572 = vlog2.pop %v1568
        %v1573 = vmul.f32 %v1572, 0.6931472
        %v1574 = vlog2.pop %v1571
        %v1575 = vmul.f32 %v1574, 0.6931472
        %v1576 = vsub.f32 %v1560, %v1573
        %v1577 = vsub.f32 %v1561, %v1575
        %1578 = vst.msk [vmem:[%s369] sm:$0xff] %vm1553, %v1576
        %1579 = vst.msk [vmem:[%s369 + $0x8] sm:$0xff] %vm1553, %v1577
        %s1580 = smul.u32 2, %s24
        %p1581 = scmp.lt.s32.totalorder %s1580, 3
        %s1582 = scalar_select %p1581, %s1580, 3
        %s1583 = smul.addr %s1582, 8
        %s1584 = scalar_lea.vmem %s9, %s1583
        // Predicated region
        $region65: #{tpu_custom_call.1} parent=55 // pred_check
          %p1585 = pneg %p236
        $region66: #{tpu_custom_call.1} parent=55 // pred_check_branch
          %1587 = sbr.rel (%p1585) target = $region68
        $region67: #{tpu_custom_call.1} parent=55 // pred_region
          %s1588 = smul.u32 2, %s24
        $region68: #{tpu_custom_call.1} parent=55 // pred_fallthru
          _
      $region56: #{tpu_custom_call.1} parent=5 // pred_fallthru
        _
      %p1589 = scmp.le.s32.totalorder 2, %s19
      // Predicated region
      $region69: #{tpu_custom_call.1} parent=5 // pred_check
        %p1590 = pneg %p1589
      $region70: #{tpu_custom_call.1} parent=5 // pred_check_branch
        %1592 = sbr.rel (%p1590) target = $region72
      $region71: #{tpu_custom_call.1} parent=5 // pred_region
        %s1593 = ssub.s32 %s19, 2
        // Predicated region
        $region73: #{tpu_custom_call.1} parent=71 // pred_check
          %p1594 = pneg %p242
        $region74: #{tpu_custom_call.1} parent=71 // pred_check_branch
          %1596 = sbr.rel (%p1594) target = $region76
        $region75: #{tpu_custom_call.1} parent=71 // pred_region
          %s1597 = smul.u32 2, %s25
          %p1598 = scmp.lt.s32.totalorder %s1597, 3
          %s1599 = scalar_select %p1598, %s1597, 3
          %s1600 = smul.addr %s1599, 8
          %s1601 = scalar_lea.vmem %s9, %s1600
        $region76: #{tpu_custom_call.1} parent=71 // pred_fallthru
          _
      $region72: #{tpu_custom_call.1} parent=5 // pred_fallthru
        _
    $region6: #{tpu_custom_call.1} parent=1 // loop_footer
      %s23 = sadd.s32 1, %s19
    $region7: #{tpu_custom_call.1} parent=1 // loop_footer_branch
      %18 = sbr.rel target = $region3
    $region8: #{tpu_custom_call.1} parent=1 // loop_exit
      _
    %1602 = vsyncpa [#allocation3], 1
    %s1603 = scalar_lea.sflag [#allocation3], 1
    %1604 = vsyncpa %s1603, 1
    %1605 = vsyncpa [#allocation5], 1

</llo_original>
